<compile_context>
chip_gen: v5e
topology: v5e:2x2
jax: 0.10.0
libtpu: 0.0.40
codegen_flags: <defaults>
</compile_context>

<pallas_src>
import functools

import jax
import jax.numpy as jnp
from jax.experimental import pallas as pl
from jax.experimental.pallas import tpu as pltpu


def _disc_kernel(x_ref,
                 w1_ref, b1_ref,
                 w2_ref, b2_ref,
                 w3_ref, b3_ref,
                 w4_ref, b4_ref,
                 out_ref, logits_ref,
                 *, compute_dtype):
    # x_ref: (C, tm) tile -- channels on sublanes, pixels lane-dense.
    x = x_ref[...].astype(compute_dtype)

    # ---- Layer 1 (C -> 64): MXU matmul.  K=C is tiny so the MXU cost is
    # negligible, but it frees the VALU slot (no f32 FMA on v5e/v6e) vs. the
    # previous broadcast-FMA unroll. --------------------------------------------
    h = jnp.dot(w1_ref[...], x, preferred_element_type=jnp.float32) + b1_ref[...]
    h = jnp.maximum(h, 0.0).astype(compute_dtype)            # (64, tm)

    # ---- Layers 2 & 3 (64 -> 128 -> 256): MXU matmuls, f32 accumulation;
    # intermediates stored in compute_dtype (bf16 on TPU). ----------------------
    h = jnp.dot(w2_ref[...], h, preferred_element_type=jnp.float32) + b2_ref[...]
    h = jnp.maximum(h, 0.0).astype(compute_dtype)            # (128, tm)
    h = jnp.dot(w3_ref[...], h, preferred_element_type=jnp.float32) + b3_ref[...]
    h = jnp.maximum(h, 0.0).astype(compute_dtype)            # (256, tm)

    # ---- Layer 4 (256 -> 1): MXU matmul against an (8, 256) weight whose rows
    # 1..7 are zero (sublane-aligned result); row 0 is the real logit row. ------
    l4 = jnp.dot(w4_ref[...], h, preferred_element_type=jnp.float32)   # (8, tm)
    logits = l4[0:1, :] + b4_ref[...]                        # (1, tm) f32

    logits_ref[...] = logits.astype(logits_ref.dtype)
    out_ref[...] = jax.nn.sigmoid(logits).astype(out_ref.dtype)


@functools.partial(jax.jit, static_argnames=("tm",))
def latent2d_grid_discriminator(x_nchw, params, *, tm=2048):
    """Forward pass. x_nchw: (N, C, H, W) float32. Returns (out, logits) as NCHW."""
    w1, b1, w2, b2, w3, b3, w4, b4 = params
    N, C, H, W = x_nchw.shape
    P = H * W
    d1, d2, d3 = w1.shape[1], w2.shape[1], w3.shape[1]
    assert tm % 128 == 0, "row tile must be a multiple of 128 lanes"

    # bf16 MXU operands on real TPUs; f32 elsewhere (CPU / interpret backends
    # cannot execute bf16 x bf16 = f32 dots).
    compute_dtype = jnp.bfloat16 if jax.default_backend() == "tpu" else jnp.float32

    # Pixel-axis tile: cap at the (128-rounded) per-image pixel count so small
    # inputs don't burn a huge tile on padding, and keep >= 2 total grid steps
    # so v7x's two TensorCores both get work.
    p_rounded = -(-P // 128) * 128
    tm_eff = min(tm, p_rounded)
    if N * (-(-P // tm_eff)) < 2 and p_rounded >= 256:
        tm_eff = -(-(p_rounded // 2) // 128) * 128
    grid_p = -(-P // tm_eff)
    P_pad = grid_p * tm_eff

    # NCHW -> (N, C, H*W): free, contiguous reshape (no transpose round trip).
    x_flat = x_nchw.reshape(N, C, P)
    if P_pad != P:
        x_flat = jnp.pad(x_flat, ((0, 0), (0, 0), (0, P_pad - P)))

    # Weights as (c_out, c_in) so the pixel axis stays on lanes; layer-4 weight
    # zero-padded to 8 sublane rows.  Biases stay f32.
    w1t = w1.T.astype(compute_dtype)                      # (d1, C)
    w2t = w2.T.astype(compute_dtype)                      # (d2, d1)
    w3t = w3.T.astype(compute_dtype)                      # (d3, d2)
    w4t = jnp.zeros((8, d3), compute_dtype).at[0, :].set(
        w4[:, 0].astype(compute_dtype))                   # (8, d3)
    b1c = b1.reshape(-1, 1).astype(jnp.float32)
    b2c = b2.reshape(-1, 1).astype(jnp.float32)
    b3c = b3.reshape(-1, 1).astype(jnp.float32)
    b4c = b4.reshape(1, 1).astype(jnp.float32)

    full = lambda n, i: (0, 0)                            # weights: resident in VMEM
    x_spec = pl.BlockSpec((None, C, tm_eff), lambda n, i: (n, 0, i))
    o_spec = pl.BlockSpec((None, 1, tm_eff), lambda n, i: (n, 0, i))

    per_pixel_flops = 2 * (C * d1 + d1 * d2 + d2 * d3 + d3)
    cost = pl.CostEstimate(
        flops=N * P_pad * per_pixel_flops,
        transcendentals=N * P_pad,
        bytes_accessed=4 * N * P_pad * (C + 2)
        + 2 * (C * d1 + d1 * d2 + d2 * d3 + 8 * d3) + 4 * (d1 + d2 + d3 + 1),
    )

    out_flat, logits_flat = pl.pallas_call(
        functools.partial(_disc_kernel, compute_dtype=compute_dtype),
        out_shape=(
            jax.ShapeDtypeStruct((N, 1, P_pad), jnp.float32),
            jax.ShapeDtypeStruct((N, 1, P_pad), jnp.float32),
        ),
        grid=(N, grid_p),
        in_specs=[
            x_spec,
            pl.BlockSpec(w1t.shape, full), pl.BlockSpec(b1c.shape, full),
            pl.BlockSpec(w2t.shape, full), pl.BlockSpec(b2c.shape, full),
            pl.BlockSpec(w3t.shape, full), pl.BlockSpec(b3c.shape, full),
            pl.BlockSpec(w4t.shape, full), pl.BlockSpec(b4c.shape, full),
        ],
        out_specs=(o_spec, o_spec),
        compiler_params=pltpu.CompilerParams(
            dimension_semantics=("parallel", "parallel"),
            vmem_limit_bytes=48 * 1024 * 1024),
        cost_estimate=cost,
    )(x_flat, w1t, b1c, w2t, b2c, w3t, b3c, w4t, b4c)

    # (N, 1, P_pad) -> drop padding -> NCHW (N, 1, H, W).
    out = out_flat[:, :, :P].reshape(N, 1, H, W)
    logits = logits_flat[:, :, :P].reshape(N, 1, H, W)
    return out, logits


def init_params(key, input_dim, df_dim=64):
    """Deterministic init mimicking PyTorch Conv2d default (kaiming-uniform-ish).

    Weights stored as (C_in, C_out); biases as (C_out,).
    """
    dims = [input_dim, df_dim * 1, df_dim * 2, df_dim * 4, 1]
    params = []
    for li in range(4):
        cin, cout = dims[li], dims[li + 1]
        key, kw, kb = jax.random.split(key, 3)
        bound = 1.0 / jnp.sqrt(cin)  # fan_in = cin * 1 * 1
        w = jax.random.uniform(kw, (cin, cout), jnp.float32, -bound, bound)
        b = jax.random.uniform(kb, (cout,), jnp.float32, -bound, bound)
        params += [w, b]
    return tuple(params)


def _reference_forward(x_nchw, params):
    """Pure-JAX f32 reference (same math as the PyTorch module)."""
    w1, b1, w2, b2, w3, b3, w4, b4 = params
    N, C, H, W = x_nchw.shape
    h = jnp.transpose(x_nchw, (0, 2, 3, 1)).reshape(-1, C)
    h = jnp.maximum(h @ w1 + b1, 0.0)
    h = jnp.maximum(h @ w2 + b2, 0.0)
    h = jnp.maximum(h @ w3 + b3, 0.0)
    logits = h @ w4 + b4
    logits = jnp.transpose(logits.reshape(N, H, W, 1), (0, 3, 1, 2))
    return jax.nn.sigmoid(logits), logits


if __name__ == "__main__":
    key = jax.random.PRNGKey(0)
    k_x, k_p = jax.random.split(key)

    N, C, H, W = 2, 4, 16, 16   # small latent 2D grid
    df_dim = 64

    x = jax.random.normal(k_x, (N, C, H, W), jnp.float32)
    params = init_params(k_p, input_dim=C, df_dim=df_dim)

    ref_out, ref_logits = _reference_forward(x, params)

    # Default tile (tm capped at 256 = H*W; grid (2, 1)).
    out, logits = latent2d_grid_discriminator(x, params)
    out, logits = jax.block_until_ready((out, logits))
    assert out.shape == (N, 1, H, W) and logits.shape == (N, 1, H, W)
    # bf16 matmul operands / intermediates on TPU -> loose tolerances vs f32 ref.
    assert jnp.allclose(logits, ref_logits, atol=6e-2, rtol=2e-2), float(
        jnp.max(jnp.abs(logits - ref_logits)))
    assert jnp.allclose(out, ref_out, atol=2e-2)

    # Smaller tile: exercises a multi-step pixel grid (grid (2, 2), no padding).
    out2, logits2 = latent2d_grid_discriminator(x, params, tm=128)
    out2, logits2 = jax.block_until_ready((out2, logits2))
    assert jnp.allclose(logits2, ref_logits, atol=6e-2, rtol=2e-2)
    assert jnp.allclose(out2, ref_out, atol=2e-2)

    print("KERNEL_OK")
</pallas_src>

<mosaic_0001>
module attributes {stable_mosaic.version = 11 : i64} {
  func.func @_disc_kernel(%arg0: i32, %arg1: i32, %arg2: memref<1x4x256xf32, #tpu.memory_space<vmem>>, %arg3: memref<64x4xf32, #tpu.memory_space<vmem>>, %arg4: memref<64x1xf32, #tpu.memory_space<vmem>>, %arg5: memref<128x64xf32, #tpu.memory_space<vmem>>, %arg6: memref<128x1xf32, #tpu.memory_space<vmem>>, %arg7: memref<256x128xf32, #tpu.memory_space<vmem>>, %arg8: memref<256x1xf32, #tpu.memory_space<vmem>>, %arg9: memref<8x256xf32, #tpu.memory_space<vmem>>, %arg10: memref<1x1xf32, #tpu.memory_space<vmem>>, %arg11: memref<1x1x256xf32, #tpu.memory_space<vmem>>, %arg12: memref<1x1x256xf32, #tpu.memory_space<vmem>>) attributes {dimension_semantics = [#tpu.dimension_semantics<parallel>, #tpu.dimension_semantics<parallel>], iteration_bounds = array<i64: 2, 1>, scalar_prefetch = 0 : i64, scratch_operands = 0 : i64, tpu.core_type = #tpu.core_type<tc>, window_params = [{transform_indices = @transform_0, window_bounds = array<i64: 1, 4, 256>}, {pipeline_mode = #tpu.pipeline_mode<synchronous>, transform_indices = @transform_1, window_bounds = array<i64: 64, 4>}, {pipeline_mode = #tpu.pipeline_mode<synchronous>, transform_indices = @transform_2, window_bounds = array<i64: 64, 1>}, {pipeline_mode = #tpu.pipeline_mode<synchronous>, transform_indices = @transform_3, window_bounds = array<i64: 128, 64>}, {pipeline_mode = #tpu.pipeline_mode<synchronous>, transform_indices = @transform_4, window_bounds = array<i64: 128, 1>}, {pipeline_mode = #tpu.pipeline_mode<synchronous>, transform_indices = @transform_5, window_bounds = array<i64: 256, 128>}, {pipeline_mode = #tpu.pipeline_mode<synchronous>, transform_indices = @transform_6, window_bounds = array<i64: 256, 1>}, {pipeline_mode = #tpu.pipeline_mode<synchronous>, transform_indices = @transform_7, window_bounds = array<i64: 8, 256>}, {pipeline_mode = #tpu.pipeline_mode<synchronous>, transform_indices = @transform_8, window_bounds = array<i64: 1, 1>}, {transform_indices = @transform_9, window_bounds = array<i64: 1, 1, 256>}, {transform_indices = @transform_10, window_bounds = array<i64: 1, 1, 256>}]} {
    %c0 = arith.constant 0 : index
    %c0_0 = arith.constant 0 : index
    %c0_1 = arith.constant 0 : index
    %0 = vector.load %arg2[%c0, %c0_0, %c0_1] : memref<1x4x256xf32, #tpu.memory_space<vmem>>, vector<1x4x256xf32>
    %1 = vector.shape_cast %0 : vector<1x4x256xf32> to vector<4x256xf32>
    %c0_2 = arith.constant 0 : index
    %c0_3 = arith.constant 0 : index
    %2 = vector.load %arg3[%c0_2, %c0_3] : memref<64x4xf32, #tpu.memory_space<vmem>>, vector<64x4xf32>
    %cst = arith.constant dense<0.000000e+00> : vector<64x256xf32>
    %3 = tpu.matmul %2, %1, %cst {dimension_numbers = #tpu.dot_dimension_numbers<[1], [0], [0], [1], [0, 0, 1, 1], [], []>} : vector<64x4xf32>, vector<4x256xf32>, vector<64x256xf32> -> vector<64x256xf32>
    %c0_4 = arith.constant 0 : index
    %c0_5 = arith.constant 0 : index
    %4 = vector.load %arg4[%c0_4, %c0_5] : memref<64x1xf32, #tpu.memory_space<vmem>>, vector<64x1xf32>
    %5 = vector.broadcast %4 : vector<64x1xf32> to vector<64x256xf32>
    %6 = arith.addf %3, %5 : vector<64x256xf32>
    %cst_6 = arith.constant 0.000000e+00 : f32
    %7 = vector.broadcast %cst_6 : f32 to vector<64x256xf32>
    %8 = arith.maximumf %6, %7 : vector<64x256xf32>
    %c0_7 = arith.constant 0 : index
    %c0_8 = arith.constant 0 : index
    %9 = vector.load %arg5[%c0_7, %c0_8] : memref<128x64xf32, #tpu.memory_space<vmem>>, vector<128x64xf32>
    %cst_9 = arith.constant dense<0.000000e+00> : vector<128x256xf32>
    %10 = tpu.matmul %9, %8, %cst_9 {dimension_numbers = #tpu.dot_dimension_numbers<[1], [0], [0], [1], [0, 0, 1, 1], [], []>} : vector<128x64xf32>, vector<64x256xf32>, vector<128x256xf32> -> vector<128x256xf32>
    %c0_10 = arith.constant 0 : index
    %c0_11 = arith.constant 0 : index
    %11 = vector.load %arg6[%c0_10, %c0_11] : memref<128x1xf32, #tpu.memory_space<vmem>>, vector<128x1xf32>
    %12 = vector.broadcast %11 : vector<128x1xf32> to vector<128x256xf32>
    %13 = arith.addf %10, %12 : vector<128x256xf32>
    %cst_12 = arith.constant 0.000000e+00 : f32
    %14 = vector.broadcast %cst_12 : f32 to vector<128x256xf32>
    %15 = arith.maximumf %13, %14 : vector<128x256xf32>
    %c0_13 = arith.constant 0 : index
    %c0_14 = arith.constant 0 : index
    %16 = vector.load %arg7[%c0_13, %c0_14] : memref<256x128xf32, #tpu.memory_space<vmem>>, vector<256x128xf32>
    %cst_15 = arith.constant dense<0.000000e+00> : vector<256x256xf32>
    %17 = tpu.matmul %16, %15, %cst_15 {dimension_numbers = #tpu.dot_dimension_numbers<[1], [0], [0], [1], [0, 0, 1, 1], [], []>} : vector<256x128xf32>, vector<128x256xf32>, vector<256x256xf32> -> vector<256x256xf32>
    %c0_16 = arith.constant 0 : index
    %c0_17 = arith.constant 0 : index
    %18 = vector.load %arg8[%c0_16, %c0_17] : memref<256x1xf32, #tpu.memory_space<vmem>>, vector<256x1xf32>
    %19 = vector.broadcast %18 : vector<256x1xf32> to vector<256x256xf32>
    %20 = arith.addf %17, %19 : vector<256x256xf32>
    %cst_18 = arith.constant 0.000000e+00 : f32
    %21 = vector.broadcast %cst_18 : f32 to vector<256x256xf32>
    %22 = arith.maximumf %20, %21 : vector<256x256xf32>
    %c0_19 = arith.constant 0 : index
    %c0_20 = arith.constant 0 : index
    %23 = vector.load %arg9[%c0_19, %c0_20] : memref<8x256xf32, #tpu.memory_space<vmem>>, vector<8x256xf32>
    %cst_21 = arith.constant dense<0.000000e+00> : vector<8x256xf32>
    %24 = tpu.matmul %23, %22, %cst_21 {dimension_numbers = #tpu.dot_dimension_numbers<[1], [0], [0], [1], [0, 0, 1, 1], [], []>} : vector<8x256xf32>, vector<256x256xf32>, vector<8x256xf32> -> vector<8x256xf32>
    %25 = vector.extract_strided_slice %24 {offsets = [0, 0], sizes = [1, 256], strides = [1, 1]} : vector<8x256xf32> to vector<1x256xf32>
    %c0_22 = arith.constant 0 : index
    %c0_23 = arith.constant 0 : index
    %26 = vector.load %arg10[%c0_22, %c0_23] : memref<1x1xf32, #tpu.memory_space<vmem>>, vector<1x1xf32>
    %27 = vector.broadcast %26 : vector<1x1xf32> to vector<1x256xf32>
    %28 = arith.addf %25, %27 : vector<1x256xf32>
    %c0_24 = arith.constant 0 : index
    %c0_25 = arith.constant 0 : index
    %c0_26 = arith.constant 0 : index
    %29 = vector.load %arg12[%c0_24, %c0_25, %c0_26] : memref<1x1x256xf32, #tpu.memory_space<vmem>>, vector<1x1x256xf32>
    %30 = vector.shape_cast %29 : vector<1x1x256xf32> to vector<1x256xf32>
    %31 = vector.shape_cast %28 : vector<1x256xf32> to vector<1x1x256xf32>
    tpu.vector_store %arg12[%c0_24, %c0_25, %c0_26], %31 {strides = array<i32>} : memref<1x1x256xf32, #tpu.memory_space<vmem>>, vector<1x1x256xf32>,
    %32 = arith.negf %28 : vector<1x256xf32>
    %33 = math.exp %32 : vector<1x256xf32>
    %cst_27 = arith.constant 1.000000e+00 : f32
    %34 = vector.broadcast %cst_27 : f32 to vector<1x256xf32>
    %35 = arith.addf %34, %33 : vector<1x256xf32>
    %36 = arith.divf %34, %35 : vector<1x256xf32>
    %c0_28 = arith.constant 0 : index
    %c0_29 = arith.constant 0 : index
    %c0_30 = arith.constant 0 : index
    %37 = vector.load %arg11[%c0_28, %c0_29, %c0_30] : memref<1x1x256xf32, #tpu.memory_space<vmem>>, vector<1x1x256xf32>
    %38 = vector.shape_cast %37 : vector<1x1x256xf32> to vector<1x256xf32>
    %39 = vector.shape_cast %36 : vector<1x256xf32> to vector<1x1x256xf32>
    tpu.vector_store %arg11[%c0_28, %c0_29, %c0_30], %39 {strides = array<i32>} : memref<1x1x256xf32, #tpu.memory_space<vmem>>, vector<1x1x256xf32>,
    return
  }
  func.func @transform_0(%arg0: i32, %arg1: i32) -> (i32, i32, i32) {
    %c0_i32 = arith.constant 0 : i32
    %c0_i32_0 = arith.constant 0 : i32
    return %arg0, %c0_i32, %arg1 : i32, i32, i32
  }
  func.func @transform_1(%arg0: i32, %arg1: i32) -> (i32, i32) {
    %c0_i32 = arith.constant 0 : i32
    %c0_i32_0 = arith.constant 0 : i32
    %c0_i32_1 = arith.constant 0 : i32
    return %c0_i32, %c0_i32_0 : i32, i32
  }
  func.func @transform_2(%arg0: i32, %arg1: i32) -> (i32, i32) {
    %c0_i32 = arith.constant 0 : i32
    %c0_i32_0 = arith.constant 0 : i32
    %c0_i32_1 = arith.constant 0 : i32
    return %c0_i32, %c0_i32_0 : i32, i32
  }
  func.func @transform_3(%arg0: i32, %arg1: i32) -> (i32, i32) {
    %c0_i32 = arith.constant 0 : i32
    %c0_i32_0 = arith.constant 0 : i32
    %c0_i32_1 = arith.constant 0 : i32
    return %c0_i32, %c0_i32_0 : i32, i32
  }
  func.func @transform_4(%arg0: i32, %arg1: i32) -> (i32, i32) {
    %c0_i32 = arith.constant 0 : i32
    %c0_i32_0 = arith.constant 0 : i32
    %c0_i32_1 = arith.constant 0 : i32
    return %c0_i32, %c0_i32_0 : i32, i32
  }
  func.func @transform_5(%arg0: i32, %arg1: i32) -> (i32, i32) {
    %c0_i32 = arith.constant 0 : i32
    %c0_i32_0 = arith.constant 0 : i32
    %c0_i32_1 = arith.constant 0 : i32
    return %c0_i32, %c0_i32_0 : i32, i32
  }
  func.func @transform_6(%arg0: i32, %arg1: i32) -> (i32, i32) {
    %c0_i32 = arith.constant 0 : i32
    %c0_i32_0 = arith.constant 0 : i32
    %c0_i32_1 = arith.constant 0 : i32
    return %c0_i32, %c0_i32_0 : i32, i32
  }
  func.func @transform_7(%arg0: i32, %arg1: i32) -> (i32, i32) {
    %c0_i32 = arith.constant 0 : i32
    %c0_i32_0 = arith.constant 0 : i32
    %c0_i32_1 = arith.constant 0 : i32
    return %c0_i32, %c0_i32_0 : i32, i32
  }
  func.func @transform_8(%arg0: i32, %arg1: i32) -> (i32, i32) {
    %c0_i32 = arith.constant 0 : i32
    %c0_i32_0 = arith.constant 0 : i32
    %c0_i32_1 = arith.constant 0 : i32
    return %c0_i32, %c0_i32_0 : i32, i32
  }
  func.func @transform_9(%arg0: i32, %arg1: i32) -> (i32, i32, i32) {
    %c0_i32 = arith.constant 0 : i32
    %c0_i32_0 = arith.constant 0 : i32
    return %arg0, %c0_i32, %arg1 : i32, i32, i32
  }
  func.func @transform_10(%arg0: i32, %arg1: i32) -> (i32, i32, i32) {
    %c0_i32 = arith.constant 0 : i32
    %c0_i32_0 = arith.constant 0 : i32
    return %arg0, %c0_i32, %arg1 : i32, i32, i32
  }
}

</mosaic_0001>

<llo_original>
// kernel: latent2d_grid_discriminator.1
$region0: #{latent2d_grid_discriminator.1}
  #allocation0 [shape = 'u32[]', space=smem, size = 0x4, offset = 0x4, fixed_abs, tag = 'smem constant byte address 0x4 - core index']
  #allocation1 [shape = 'u32[72,128]{1,0:T(1,128)}', space=vmem, size = 0x9000, scoped, tag = 'internal scratch']
  #allocation2 [shape = 'f32[1,1]{1,0:T(1,128)S(1)}', space=vmem, size = 0x200, scoped, tag = 'scoped memory for latent2d_grid_discriminator.1']
  %s0 = inlined_call_operand.vmem [shape: f32[2,4,256], index: 0, kind: input, shape index: {}]
  %s1 = inlined_call_operand.vmem [shape: f32[64,4], index: 1, kind: input, shape index: {}]
  %s2 = inlined_call_operand.vmem [shape: f32[64,1], index: 2, kind: input, shape index: {}]
  %s3 = inlined_call_operand.vmem [shape: f32[128,64], index: 3, kind: input, shape index: {}]
  %s4 = inlined_call_operand.vmem [shape: f32[128,1], index: 4, kind: input, shape index: {}]
  %s5 = inlined_call_operand.vmem [shape: f32[256,128], index: 5, kind: input, shape index: {}]
  %s6 = inlined_call_operand.vmem [shape: f32[256,1], index: 6, kind: input, shape index: {}]
  %s7 = inlined_call_operand.vmem [shape: f32[8,256], index: 7, kind: input, shape index: {}]
  %s8 = inlined_call_operand.<no memory space> [shape: f32[1,1], index: 8, kind: input, shape index: {}]
  %s9 = inlined_call_operand.vmem [shape: f32[2,1,256], index: 9, kind: output, shape index: {0}]
  %s10 = inlined_call_operand.vmem [shape: f32[2,1,256], index: 10, kind: output, shape index: {1}]
  %11 = xla_tuple %s9, %s10
  %s12 = sld [smem:[#allocation0]]
  $region77: #{latent2d_grid_discriminator.1} parent=0
    _
  %s14 = ssub.s32 1, %s12
  %s15 = scalar_select 0, %s14, %s12
  %v16 = vstv %s8
  %17 = vst [vmem:[#allocation2] sm:$0x1] %v16
  loop: start=0, step=1, limit=4
  $region2: #{latent2d_grid_discriminator.1} parent=0 // loop_pre_header
    _
  $region3: #{latent2d_grid_discriminator.1} parent=0 // loop_header
    %s19 = sphi 0, %s23
    %p20 = scmp.ge.s32.totalorder %s19, 4
    %s26 = sphi 0, %s38
    %s27 = sphi 0, %s34
    %s28 = sphi 0, %s26
    %s29 = sphi 0, %s27
    %s30 = sphi 0, %s28
    %s31 = sphi 0, %s29
    %s43 = sphi 0, %s45
    %s46 = sphi 0, %s43
    %s47 = sphi 0, %s46
    %s63 = sphi 0, %s47
    %s67 = sphi 0, %s67
    %s69 = sphi 0, %s67
    %s70 = sphi 0, %s69
    %s84 = sphi 0, %s70
    %s88 = sphi 0, %s88
    %s90 = sphi 0, %s88
    %s91 = sphi 0, %s90
    %s105 = sphi 0, %s91
    %s109 = sphi 0, %s109
    %s111 = sphi 0, %s109
    %s112 = sphi 0, %s111
    %s126 = sphi 0, %s112
    %s130 = sphi 0, %s130
    %s132 = sphi 0, %s130
    %s133 = sphi 0, %s132
    %s147 = sphi 0, %s133
    %s151 = sphi 0, %s151
    %s153 = sphi 0, %s151
    %s154 = sphi 0, %s153
    %s168 = sphi 0, %s154
    %s172 = sphi 0, %s172
    %s174 = sphi 0, %s172
    %s175 = sphi 0, %s174
    %s189 = sphi 0, %s175
    %s193 = sphi 0, %s193
    %s195 = sphi 0, %s193
    %s196 = sphi 0, %s195
    %s210 = sphi 0, %s196
    %s214 = sphi 0, %s214
    %s216 = sphi 0, %s214
    %s217 = sphi 0, %s216
    %s231 = sphi 0, %s217
    %s239 = sphi 0, %s241
    %s242 = sphi 0, %s239
    %s243 = sphi 0, %s242
    %s259 = sphi 0, %s243
    %s267 = sphi 0, %s269
    %s270 = sphi 0, %s267
    %s271 = sphi 0, %s270
    %s287 = sphi 0, %s271
  $region4: #{latent2d_grid_discriminator.1} parent=0 // loop_header_branch
    %22 = sbr.rel (%p20) target = $region8
  $region5: #{latent2d_grid_discriminator.1} parent=0 // loop_body
    %s24 = ssub.s32 %s19, 1
    %s25 = ssub.s32 %s19, 2
    %s32 = sadd.s32 1, %s27
    %p33 = scmp.ge.s32.totalorder %s32, 1
    %s34 = scalar_select %p33, 0, %s32
    %s35 = sadd.s32 1, %s26
    %s36 = scalar_select %p33, %s35, %s26
    %p37 = scmp.ge.s32.totalorder %s36, 2
    %s38 = scalar_select %p37, 0, %s36
    %s39 = ssub.s32 %s26, %s38
    %s40 = ssub.s32 %s27, %s34
    %s41 = sor.u32 %s39, %s40
    %p42 = scmp.eq.s32.totalorder %s41, 0
    %s44 = sadd.s32 %s43, 1
    %s45 = scalar_select %p42, %s43, %s44
    %p48 = pneg %p42
    %p49 = scmp.eq.s32.totalorder %s19, 1
    %p50 = por %p48, %p49
    %p51 = scmp.ne.s32.totalorder %s43, %s46
    %p52 = scmp.eq.s32.totalorder %s19, 0
    %p53 = por %p51, %p52
    %p54 = scmp.ne.s32.totalorder %s43, %s46
    %p55 = scmp.eq.s32.totalorder %s24, 1
    %p56 = por %p54, %p55
    %p57 = scmp.ne.s32.totalorder %s46, %s47
    %p58 = scmp.eq.s32.totalorder %s24, 0
    %p59 = por %p57, %p58
    %p60 = scmp.ne.s32.totalorder %s46, %s47
    %p61 = scmp.eq.s32.totalorder %s25, 1
    %p62 = por %p60, %p61
    %p64 = scmp.ne.s32.totalorder %s47, %s63
    %p65 = scmp.eq.s32.totalorder %s25, 0
    %p66 = por %p64, %p65
    %s68 = sadd.s32 %s67, 1
    %p71 = scmp.eq.s32.totalorder %s19, 1
    %p72 = scmp.ne.s32.totalorder %s67, %s69
    %p73 = scmp.eq.s32.totalorder %s19, 0
    %p74 = por %p72, %p73
    %p75 = scmp.ne.s32.totalorder %s67, %s69
    %p76 = scmp.eq.s32.totalorder %s24, 1
    %p77 = por %p75, %p76
    %p78 = scmp.ne.s32.totalorder %s69, %s70
    %p79 = scmp.eq.s32.totalorder %s24, 0
    %p80 = por %p78, %p79
    %p81 = scmp.ne.s32.totalorder %s69, %s70
    %p82 = scmp.eq.s32.totalorder %s25, 1
    %p83 = por %p81, %p82
    %p85 = scmp.ne.s32.totalorder %s70, %s84
    %p86 = scmp.eq.s32.totalorder %s25, 0
    %p87 = por %p85, %p86
    %s89 = sadd.s32 %s88, 1
    %p92 = scmp.eq.s32.totalorder %s19, 1
    %p93 = scmp.ne.s32.totalorder %s88, %s90
    %p94 = scmp.eq.s32.totalorder %s19, 0
    %p95 = por %p93, %p94
    %p96 = scmp.ne.s32.totalorder %s88, %s90
    %p97 = scmp.eq.s32.totalorder %s24, 1
    %p98 = por %p96, %p97
    %p99 = scmp.ne.s32.totalorder %s90, %s91
    %p100 = scmp.eq.s32.totalorder %s24, 0
    %p101 = por %p99, %p100
    %p102 = scmp.ne.s32.totalorder %s90, %s91
    %p103 = scmp.eq.s32.totalorder %s25, 1
    %p104 = por %p102, %p103
    %p106 = scmp.ne.s32.totalorder %s91, %s105
    %p107 = scmp.eq.s32.totalorder %s25, 0
    %p108 = por %p106, %p107
    %s110 = sadd.s32 %s109, 1
    %p113 = scmp.eq.s32.totalorder %s19, 1
    %p114 = scmp.ne.s32.totalorder %s109, %s111
    %p115 = scmp.eq.s32.totalorder %s19, 0
    %p116 = por %p114, %p115
    %p117 = scmp.ne.s32.totalorder %s109, %s111
    %p118 = scmp.eq.s32.totalorder %s24, 1
    %p119 = por %p117, %p118
    %p120 = scmp.ne.s32.totalorder %s111, %s112
    %p121 = scmp.eq.s32.totalorder %s24, 0
    %p122 = por %p120, %p121
    %p123 = scmp.ne.s32.totalorder %s111, %s112
    %p124 = scmp.eq.s32.totalorder %s25, 1
    %p125 = por %p123, %p124
    %p127 = scmp.ne.s32.totalorder %s112, %s126
    %p128 = scmp.eq.s32.totalorder %s25, 0
    %p129 = por %p127, %p128
    %s131 = sadd.s32 %s130, 1
    %p134 = scmp.eq.s32.totalorder %s19, 1
    %p135 = scmp.ne.s32.totalorder %s130, %s132
    %p136 = scmp.eq.s32.totalorder %s19, 0
    %p137 = por %p135, %p136
    %p138 = scmp.ne.s32.totalorder %s130, %s132
    %p139 = scmp.eq.s32.totalorder %s24, 1
    %p140 = por %p138, %p139
    %p141 = scmp.ne.s32.totalorder %s132, %s133
    %p142 = scmp.eq.s32.totalorder %s24, 0
    %p143 = por %p141, %p142
    %p144 = scmp.ne.s32.totalorder %s132, %s133
    %p145 = scmp.eq.s32.totalorder %s25, 1
    %p146 = por %p144, %p145
    %p148 = scmp.ne.s32.totalorder %s133, %s147
    %p149 = scmp.eq.s32.totalorder %s25, 0
    %p150 = por %p148, %p149
    %s152 = sadd.s32 %s151, 1
    %p155 = scmp.eq.s32.totalorder %s19, 1
    %p156 = scmp.ne.s32.totalorder %s151, %s153
    %p157 = scmp.eq.s32.totalorder %s19, 0
    %p158 = por %p156, %p157
    %p159 = scmp.ne.s32.totalorder %s151, %s153
    %p160 = scmp.eq.s32.totalorder %s24, 1
    %p161 = por %p159, %p160
    %p162 = scmp.ne.s32.totalorder %s153, %s154
    %p163 = scmp.eq.s32.totalorder %s24, 0
    %p164 = por %p162, %p163
    %p165 = scmp.ne.s32.totalorder %s153, %s154
    %p166 = scmp.eq.s32.totalorder %s25, 1
    %p167 = por %p165, %p166
    %p169 = scmp.ne.s32.totalorder %s154, %s168
    %p170 = scmp.eq.s32.totalorder %s25, 0
    %p171 = por %p169, %p170
    %s173 = sadd.s32 %s172, 1
    %p176 = scmp.eq.s32.totalorder %s19, 1
    %p177 = scmp.ne.s32.totalorder %s172, %s174
    %p178 = scmp.eq.s32.totalorder %s19, 0
    %p179 = por %p177, %p178
    %p180 = scmp.ne.s32.totalorder %s172, %s174
    %p181 = scmp.eq.s32.totalorder %s24, 1
    %p182 = por %p180, %p181
    %p183 = scmp.ne.s32.totalorder %s174, %s175
    %p184 = scmp.eq.s32.totalorder %s24, 0
    %p185 = por %p183, %p184
    %p186 = scmp.ne.s32.totalorder %s174, %s175
    %p187 = scmp.eq.s32.totalorder %s25, 1
    %p188 = por %p186, %p187
    %p190 = scmp.ne.s32.totalorder %s175, %s189
    %p191 = scmp.eq.s32.totalorder %s25, 0
    %p192 = por %p190, %p191
    %s194 = sadd.s32 %s193, 1
    %p197 = scmp.eq.s32.totalorder %s19, 1
    %p198 = scmp.ne.s32.totalorder %s193, %s195
    %p199 = scmp.eq.s32.totalorder %s19, 0
    %p200 = por %p198, %p199
    %p201 = scmp.ne.s32.totalorder %s193, %s195
    %p202 = scmp.eq.s32.totalorder %s24, 1
    %p203 = por %p201, %p202
    %p204 = scmp.ne.s32.totalorder %s195, %s196
    %p205 = scmp.eq.s32.totalorder %s24, 0
    %p206 = por %p204, %p205
    %p207 = scmp.ne.s32.totalorder %s195, %s196
    %p208 = scmp.eq.s32.totalorder %s25, 1
    %p209 = por %p207, %p208
    %p211 = scmp.ne.s32.totalorder %s196, %s210
    %p212 = scmp.eq.s32.totalorder %s25, 0
    %p213 = por %p211, %p212
    %s215 = sadd.s32 %s214, 1
    %p218 = scmp.eq.s32.totalorder %s19, 1
    %p219 = scmp.ne.s32.totalorder %s214, %s216
    %p220 = scmp.eq.s32.totalorder %s19, 0
    %p221 = por %p219, %p220
    %p222 = scmp.ne.s32.totalorder %s214, %s216
    %p223 = scmp.eq.s32.totalorder %s24, 1
    %p224 = por %p222, %p223
    %p225 = scmp.ne.s32.totalorder %s216, %s217
    %p226 = scmp.eq.s32.totalorder %s24, 0
    %p227 = por %p225, %p226
    %p228 = scmp.ne.s32.totalorder %s216, %s217
    %p229 = scmp.eq.s32.totalorder %s25, 1
    %p230 = por %p228, %p229
    %p232 = scmp.ne.s32.totalorder %s217, %s231
    %p233 = scmp.eq.s32.totalorder %s25, 0
    %p234 = por %p232, %p233
    %s235 = ssub.s32 %s26, %s38
    %s236 = ssub.s32 %s27, %s34
    %s237 = sor.u32 %s235, %s236
    %p238 = scmp.eq.s32.totalorder %s237, 0
    %s240 = sadd.s32 %s239, 1
    %s241 = scalar_select %p238, %s239, %s240
    %p244 = pneg %p238
    %p245 = scmp.eq.s32.totalorder %s19, 1
    %p246 = por %p244, %p245
    %p247 = scmp.ne.s32.totalorder %s239, %s242
    %p248 = scmp.eq.s32.totalorder %s19, 0
    %p249 = por %p247, %p248
    %p250 = scmp.ne.s32.totalorder %s239, %s242
    %p251 = scmp.eq.s32.totalorder %s24, 1
    %p252 = por %p250, %p251
    %p253 = scmp.ne.s32.totalorder %s242, %s243
    %p254 = scmp.eq.s32.totalorder %s24, 0
    %p255 = por %p253, %p254
    %p256 = scmp.ne.s32.totalorder %s242, %s243
    %p257 = scmp.eq.s32.totalorder %s25, 1
    %p258 = por %p256, %p257
    %p260 = scmp.ne.s32.totalorder %s243, %s259
    %p261 = scmp.eq.s32.totalorder %s25, 0
    %p262 = por %p260, %p261
    %s263 = ssub.s32 %s26, %s38
    %s264 = ssub.s32 %s27, %s34
    %s265 = sor.u32 %s263, %s264
    %p266 = scmp.eq.s32.totalorder %s265, 0
    %s268 = sadd.s32 %s267, 1
    %s269 = scalar_select %p266, %s267, %s268
    %p272 = pneg %p266
    %p273 = scmp.eq.s32.totalorder %s19, 1
    %p274 = por %p272, %p273
    %p275 = scmp.ne.s32.totalorder %s267, %s270
    %p276 = scmp.eq.s32.totalorder %s19, 0
    %p277 = por %p275, %p276
    %p278 = scmp.ne.s32.totalorder %s267, %s270
    %p279 = scmp.eq.s32.totalorder %s24, 1
    %p280 = por %p278, %p279
    %p281 = scmp.ne.s32.totalorder %s270, %s271
    %p282 = scmp.eq.s32.totalorder %s24, 0
    %p283 = por %p281, %p282
    %p284 = scmp.ne.s32.totalorder %s270, %s271
    %p285 = scmp.eq.s32.totalorder %s25, 1
    %p286 = por %p284, %p285
    %p288 = scmp.ne.s32.totalorder %s271, %s287
    %p289 = scmp.eq.s32.totalorder %s25, 0
    %p290 = por %p288, %p289
    %p291 = scmp.le.s32.totalorder 1, %s19
    %p292 = scmp.lt.s32.totalorder %s19, 3
    %p293 = pnand %p291, %p292
    %p294 = pneg %p293
    // Predicated region
    $region9: #{latent2d_grid_discriminator.1} parent=5 // pred_check
      _
    $region10: #{latent2d_grid_discriminator.1} parent=5 // pred_check_branch
      %296 = sbr.rel (%p293) target = $region12
    $region11: #{latent2d_grid_discriminator.1} parent=5 // pred_region
      %s297 = ssub.s32 %s19, 1
      // Predicated region
      $region13: #{latent2d_grid_discriminator.1} parent=11 // pred_check
        %p298 = pneg %p80
      $region14: #{latent2d_grid_discriminator.1} parent=11 // pred_check_branch
        %300 = sbr.rel (%p298) target = $region16
      $region15: #{latent2d_grid_discriminator.1} parent=11 // pred_region
        _
      $region16: #{latent2d_grid_discriminator.1} parent=11 // pred_fallthru
        _
      // Predicated region
      $region17: #{latent2d_grid_discriminator.1} parent=11 // pred_check
        %p301 = pneg %p101
      $region18: #{latent2d_grid_discriminator.1} parent=11 // pred_check_branch
        %303 = sbr.rel (%p301) target = $region20
      $region19: #{latent2d_grid_discriminator.1} parent=11 // pred_region
        _
      $region20: #{latent2d_grid_discriminator.1} parent=11 // pred_fallthru
        _
      // Predicated region
      $region21: #{latent2d_grid_discriminator.1} parent=11 // pred_check
        %p304 = pneg %p122
      $region22: #{latent2d_grid_discriminator.1} parent=11 // pred_check_branch
        %306 = sbr.rel (%p304) target = $region24
      $region23: #{latent2d_grid_discriminator.1} parent=11 // pred_region
        _
      $region24: #{latent2d_grid_discriminator.1} parent=11 // pred_fallthru
        _
      // Predicated region
      $region25: #{latent2d_grid_discriminator.1} parent=11 // pred_check
        %p307 = pneg %p143
      $region26: #{latent2d_grid_discriminator.1} parent=11 // pred_check_branch
        %309 = sbr.rel (%p307) target = $region28
      $region27: #{latent2d_grid_discriminator.1} parent=11 // pred_region
        _
      $region28: #{latent2d_grid_discriminator.1} parent=11 // pred_fallthru
        _
      // Predicated region
      $region29: #{latent2d_grid_discriminator.1} parent=11 // pred_check
        %p310 = pneg %p164
      $region30: #{latent2d_grid_discriminator.1} parent=11 // pred_check_branch
        %312 = sbr.rel (%p310) target = $region32
      $region31: #{latent2d_grid_discriminator.1} parent=11 // pred_region
        _
      $region32: #{latent2d_grid_discriminator.1} parent=11 // pred_fallthru
        _
      // Predicated region
      $region33: #{latent2d_grid_discriminator.1} parent=11 // pred_check
        %p313 = pneg %p185
      $region34: #{latent2d_grid_discriminator.1} parent=11 // pred_check_branch
        %315 = sbr.rel (%p313) target = $region36
      $region35: #{latent2d_grid_discriminator.1} parent=11 // pred_region
        _
      $region36: #{latent2d_grid_discriminator.1} parent=11 // pred_fallthru
        _
      // Predicated region
      $region37: #{latent2d_grid_discriminator.1} parent=11 // pred_check
        %p316 = pneg %p206
      $region38: #{latent2d_grid_discriminator.1} parent=11 // pred_check_branch
        %318 = sbr.rel (%p316) target = $region40
      $region39: #{latent2d_grid_discriminator.1} parent=11 // pred_region
        _
      $region40: #{latent2d_grid_discriminator.1} parent=11 // pred_fallthru
        _
      // Predicated region
      $region41: #{latent2d_grid_discriminator.1} parent=11 // pred_check
        %p319 = pneg %p227
      $region42: #{latent2d_grid_discriminator.1} parent=11 // pred_check_branch
        %321 = sbr.rel (%p319) target = $region44
      $region43: #{latent2d_grid_discriminator.1} parent=11 // pred_region
        _
      $region44: #{latent2d_grid_discriminator.1} parent=11 // pred_fallthru
        _
    $region12: #{latent2d_grid_discriminator.1} parent=5 // pred_fallthru
      _
    %p322 = scmp.lt.s32.totalorder %s19, 2
    // Predicated region
    $region45: #{latent2d_grid_discriminator.1} parent=5 // pred_check
      %p323 = pneg %p322
    $region46: #{latent2d_grid_discriminator.1} parent=5 // pred_check_branch
      %325 = sbr.rel (%p323) target = $region48
    $region47: #{latent2d_grid_discriminator.1} parent=5 // pred_region
      // Predicated region
      $region49: #{latent2d_grid_discriminator.1} parent=47 // pred_check
        %p326 = pneg %p53
      $region50: #{latent2d_grid_discriminator.1} parent=47 // pred_check_branch
        %328 = sbr.rel (%p326) target = $region52
      $region51: #{latent2d_grid_discriminator.1} parent=47 // pred_region
        %s329 = smul.u32 2, %s27
        %p330 = scmp.lt.s32.totalorder %s26, 1
        %s331 = scalar_select %p330, %s26, 1
        %p332 = scmp.lt.s32.totalorder %s329, 1
        %s333 = scalar_select %p332, %s329, 1
        %s334 = smul.addr %s331, 2
        %s335 = sadd.s32 %s333, %s334
        %s336 = smul.addr %s335, 4
        %s337 = scalar_lea.vmem %s0, %s336
        %s338 = smul.u32 2, %s27
      $region52: #{latent2d_grid_discriminator.1} parent=47 // pred_fallthru
        _
    $region48: #{latent2d_grid_discriminator.1} parent=5 // pred_fallthru
      _
    %p339 = scmp.le.s32.totalorder 1, %s19
    %p340 = scmp.lt.s32.totalorder %s19, 3
    %p341 = pnand %p339, %p340
    %p342 = pneg %p341
    // Predicated region
    $region53: #{latent2d_grid_discriminator.1} parent=5 // pred_check
      _
    $region54: #{latent2d_grid_discriminator.1} parent=5 // pred_check_branch
      %344 = sbr.rel (%p341) target = $region56
    $region55: #{latent2d_grid_discriminator.1} parent=5 // pred_region
      %s345 = ssub.s32 %s19, 1
      %s346 = smul.u32 2, %s29
      %p347 = scmp.lt.s32.totalorder %s28, 1
      %s348 = scalar_select %p347, %s28, 1
      %p349 = scmp.lt.s32.totalorder %s346, 1
      %s350 = scalar_select %p349, %s346, 1
      %s351 = smul.addr %s348, 2
      %s352 = sadd.s32 %s350, %s351
      %s353 = smul.addr %s352, 4
      %s354 = scalar_lea.vmem %s0, %s353
      %p355 = pneg %p59
      %p356 = pneg %p56
      %p357 = pneg %p80
      %p358 = pneg %p77
      %p359 = pneg %p101
      %p360 = pneg %p98
      %p361 = pneg %p122
      %p362 = pneg %p119
      %p363 = pneg %p143
      %p364 = pneg %p140
      %p365 = pneg %p164
      %p366 = pneg %p161
      %p367 = pneg %p185
      %p368 = pneg %p182
      %p369 = pneg %p206
      %p370 = pneg %p203
      %p371 = pneg %p227
      %p372 = pneg %p224
      %p373 = pneg %p255
      %p374 = pneg %p252
      %s375 = smul.u32 2, %s29
      %p376 = scmp.lt.s32.totalorder %s28, 1
      %s377 = scalar_select %p376, %s28, 1
      %p378 = scmp.lt.s32.totalorder %s375, 1
      %s379 = scalar_select %p378, %s375, 1
      %s380 = smul.addr %s377, 2
      %s381 = sadd.s32 %s379, %s380
      %s382 = scalar_lea.vmem %s9, %s381
      %p383 = pneg %p283
      %p384 = pneg %p280
      %s385 = smul.u32 2, %s29
      %p386 = scmp.lt.s32.totalorder %s28, 1
      %s387 = scalar_select %p386, %s28, 1
      %p388 = scmp.lt.s32.totalorder %s385, 1
      %s389 = scalar_select %p388, %s385, 1
      %s390 = smul.addr %s387, 2
      %s391 = sadd.s32 %s389, %s390
      %s392 = scalar_lea.vmem %s10, %s391
      %s393 = smul.u32 2, %s29
      %p394 = scmp.lt.s32.totalorder %s28, 1
      %s395 = scalar_select %p394, %s28, 1
      %p396 = scmp.lt.s32.totalorder %s393, 1
      %s397 = scalar_select %p396, %s393, 1
      %s398 = smul.addr %s395, 2
      %s399 = sadd.s32 %s397, %s398
      %s400 = smul.addr %s399, 4
      %s401 = scalar_lea.vmem %s0, %s400
      %s402 = smul.u32 2, %s29
      %s403 = smul.u32 2, %s29
      %p404 = scmp.lt.s32.totalorder %s28, 1
      %s405 = scalar_select %p404, %s28, 1
      %p406 = scmp.lt.s32.totalorder %s403, 1
      %s407 = scalar_select %p406, %s403, 1
      %s408 = smul.addr %s405, 2
      %s409 = sadd.s32 %s407, %s408
      %s410 = scalar_lea.vmem %s9, %s409
      %s411 = smul.u32 2, %s29
      %s412 = smul.u32 2, %s29
      %p413 = scmp.lt.s32.totalorder %s28, 1
      %s414 = scalar_select %p413, %s28, 1
      %p415 = scmp.lt.s32.totalorder %s412, 1
      %s416 = scalar_select %p415, %s412, 1
      %s417 = smul.addr %s414, 2
      %s418 = sadd.s32 %s416, %s417
      %s419 = scalar_lea.vmem %s10, %s418
      %s420 = smul.u32 2, %s29
      %v421 = vld [vmem:[%s401] sm:$0xff]
      %v422 = vld [vmem:[%s1] sm:$0xff]
      %v423 = vld [vmem:[%s1 + $0x8] sm:$0xff]
      %v424 = vld [vmem:[%s1 + $0x10] sm:$0xff]
      %v425 = vld [vmem:[%s1 + $0x18] sm:$0xff]
      %v426 = vld [vmem:[%s1 + $0x20] sm:$0xff]
      %v427 = vld [vmem:[%s1 + $0x28] sm:$0xff]
      %v428 = vld [vmem:[%s1 + $0x30] sm:$0xff]
      %v429 = vld [vmem:[%s1 + $0x38] sm:$0xff]
      %v430 = vld [vmem:[%s2] sm:$0xff]
      %v431 = vld [vmem:[%s2 + $0x8] sm:$0xff]
      %v432 = vld [vmem:[%s2 + $0x10] sm:$0xff]
      %v433 = vld [vmem:[%s2 + $0x18] sm:$0xff]
      %v434 = vld [vmem:[%s2 + $0x20] sm:$0xff]
      %v435 = vld [vmem:[%s2 + $0x28] sm:$0xff]
      %v436 = vld [vmem:[%s2 + $0x30] sm:$0xff]
      %v437 = vld [vmem:[%s2 + $0x38] sm:$0xff]
      %439 = vset.pattern.permute.xlu0 0
      %440 = vperm.xlu0 %439, %v430
      %v441 = vpop.permute.xlu0 %440
      %444 = vset.pattern.permute.xlu0 0
      %445 = vperm.xlu0 %444, %v431
      %v446 = vpop.permute.xlu0 %445
      %449 = vset.pattern.permute.xlu0 0
      %450 = vperm.xlu0 %449, %v432
      %v451 = vpop.permute.xlu0 %450
      %454 = vset.pattern.permute.xlu0 0
      %455 = vperm.xlu0 %454, %v433
      %v456 = vpop.permute.xlu0 %455
      %459 = vset.pattern.permute.xlu0 0
      %460 = vperm.xlu0 %459, %v434
      %v461 = vpop.permute.xlu0 %460
      %464 = vset.pattern.permute.xlu0 0
      %465 = vperm.xlu0 %464, %v435
      %v466 = vpop.permute.xlu0 %465
      %469 = vset.pattern.permute.xlu0 0
      %470 = vperm.xlu0 %469, %v436
      %v471 = vpop.permute.xlu0 %470
      %474 = vset.pattern.permute.xlu0 0
      %475 = vperm.xlu0 %474, %v437
      %v476 = vpop.permute.xlu0 %475
      %479 = vst [vmem:[#allocation1] ss:$2 sm:$0xff] %v421
      %v480 = vld.sshfl [vmem:[#allocation1] sm:$0xff pattern:$0x75316420]
      %v481 = vld.sshfl [vmem:[#allocation1 + $0x8] sm:$0xff pattern:$0x75316420]
      %vm482 = vcmask 31744
      %v484 = vsel %vm482, %v422, 0
      %v487 = vsel %vm482, %v423, 0
      %v490 = vsel %vm482, %v424, 0
      %v493 = vsel %vm482, %v425, 0
      %v496 = vsel %vm482, %v426, 0
      %v499 = vsel %vm482, %v427, 0
      %v502 = vsel %vm482, %v428, 0
      %v505 = vsel %vm482, %v429, 0
      %vm507 = vcmask 1043456
      %v508 = vsel %vm507, %v480, 0
      %v510 = vsel %vm507, %v481, 0
      %512 = vmatpush.msra.mxu0 0.0
      %513 = vmatpush.msra.mxu0 0.0
      %514 = vmatpush.msra.mxu0 0.0
      %515 = vmatpush.msra.mxu0 0.0
      %516 = vmatpush.msra.mxu0 0.0
      %517 = vmatpush.msra.mxu0 0.0
      %518 = vmatpush.msra.mxu0 0.0
      %519 = vmatpush.msra.mxu0 0.0
      %520 = vmatpush.msra.mxu0 0.0
      %521 = vmatpush.msra.mxu0 0.0
      %522 = vmatpush.msra.mxu0 0.0
      %523 = vmatpush.msra.mxu0 0.0
      %524 = vmatpush.msra.mxu0 0.0
      %525 = vmatpush.msra.mxu0 0.0
      %526 = vmatpush.msra.mxu0 0.0
      %527 = vmatpush.msra.mxu0 %v508
      %528 = vmatmul.f32.gmra.mxu0 %v484
      %v529 = vpop.f32.mrf.mxu0
      %v530 = vadd.f32 %v441, %v529
      %531 = vmatmul.f32.gmra.mxu0 %v487
      %v532 = vpop.f32.mrf.mxu0
      %v533 = vadd.f32 %v446, %v532
      %534 = vmatmul.f32.gmra.mxu0 %v490
      %v535 = vpop.f32.mrf.mxu0
      %v536 = vadd.f32 %v451, %v535
      %537 = vmatmul.f32.gmra.mxu0 %v493
      %v538 = vpop.f32.mrf.mxu0
      %v539 = vadd.f32 %v456, %v538
      %540 = vmatmul.f32.gmra.mxu0 %v496
      %v541 = vpop.f32.mrf.mxu0
      %v542 = vadd.f32 %v461, %v541
      %543 = vmatmul.f32.gmra.mxu0 %v499
      %v544 = vpop.f32.mrf.mxu0
      %v545 = vadd.f32 %v466, %v544
      %546 = vmatmul.f32.gmra.mxu0 %v502
      %v547 = vpop.f32.mrf.mxu0
      %v548 = vadd.f32 %v471, %v547
      %549 = vmatmul.f32.gmra.mxu0 %v505
      %v550 = vpop.f32.mrf.mxu0
      %v551 = vadd.f32 %v476, %v550
      %552 = vdwg.mxu0
      %553 = vmatpush.msra.mxu0 0.0
      %554 = vmatpush.msra.mxu0 0.0
      %555 = vmatpush.msra.mxu0 0.0
      %556 = vmatpush.msra.mxu0 0.0
      %557 = vmatpush.msra.mxu0 0.0
      %558 = vmatpush.msra.mxu0 0.0
      %559 = vmatpush.msra.mxu0 0.0
      %560 = vmatpush.msra.mxu0 0.0
      %561 = vmatpush.msra.mxu0 0.0
      %562 = vmatpush.msra.mxu0 0.0
      %563 = vmatpush.msra.mxu0 0.0
      %564 = vmatpush.msra.mxu0 0.0
      %565 = vmatpush.msra.mxu0 0.0
      %566 = vmatpush.msra.mxu0 0.0
      %567 = vmatpush.msra.mxu0 0.0
      %568 = vmatpush.msra.mxu0 %v510
      %569 = vmatmul.f32.gmra.mxu0 %v484
      %v570 = vpop.f32.mrf.mxu0
      %v571 = vadd.f32 %v441, %v570
      %572 = vmatmul.f32.gmra.mxu0 %v487
      %v573 = vpop.f32.mrf.mxu0
      %v574 = vadd.f32 %v446, %v573
      %575 = vmatmul.f32.gmra.mxu0 %v490
      %v576 = vpop.f32.mrf.mxu0
      %v577 = vadd.f32 %v451, %v576
      %578 = vmatmul.f32.gmra.mxu0 %v493
      %v579 = vpop.f32.mrf.mxu0
      %v580 = vadd.f32 %v456, %v579
      %581 = vmatmul.f32.gmra.mxu0 %v496
      %v582 = vpop.f32.mrf.mxu0
      %v583 = vadd.f32 %v461, %v582
      %584 = vmatmul.f32.gmra.mxu0 %v499
      %v585 = vpop.f32.mrf.mxu0
      %v586 = vadd.f32 %v466, %v585
      %587 = vmatmul.f32.gmra.mxu0 %v502
      %v588 = vpop.f32.mrf.mxu0
      %v589 = vadd.f32 %v471, %v588
      %590 = vmatmul.f32.gmra.mxu0 %v505
      %v591 = vpop.f32.mrf.mxu0
      %v592 = vadd.f32 %v476, %v591
      %593 = vdwg.mxu0
      %v594 = vmax.f32 %v530, 0.0
      %v595 = vmax.f32 %v571, 0.0
      %v596 = vmax.f32 %v533, 0.0
      %v597 = vmax.f32 %v574, 0.0
      %v598 = vmax.f32 %v536, 0.0
      %v599 = vmax.f32 %v577, 0.0
      %v600 = vmax.f32 %v539, 0.0
      %v601 = vmax.f32 %v580, 0.0
      %v602 = vmax.f32 %v542, 0.0
      %v603 = vmax.f32 %v583, 0.0
      %v604 = vmax.f32 %v545, 0.0
      %v605 = vmax.f32 %v586, 0.0
      %v606 = vmax.f32 %v548, 0.0
      %v607 = vmax.f32 %v589, 0.0
      %v608 = vmax.f32 %v551, 0.0
      %v609 = vmax.f32 %v592, 0.0
      %v610 = vld [vmem:[%s3] sm:$0xff]
      %v611 = vld [vmem:[%s3 + $0x8] sm:$0xff]
      %v612 = vld [vmem:[%s3 + $0x10] sm:$0xff]
      %v613 = vld [vmem:[%s3 + $0x18] sm:$0xff]
      %v614 = vld [vmem:[%s3 + $0x20] sm:$0xff]
      %v615 = vld [vmem:[%s3 + $0x28] sm:$0xff]
      %v616 = vld [vmem:[%s3 + $0x30] sm:$0xff]
      %v617 = vld [vmem:[%s3 + $0x38] sm:$0xff]
      %v618 = vld [vmem:[%s3 + $0x40] sm:$0xff]
      %v619 = vld [vmem:[%s3 + $0x48] sm:$0xff]
      %v620 = vld [vmem:[%s3 + $0x50] sm:$0xff]
      %v621 = vld [vmem:[%s3 + $0x58] sm:$0xff]
      %v622 = vld [vmem:[%s3 + $0x60] sm:$0xff]
      %v623 = vld [vmem:[%s3 + $0x68] sm:$0xff]
      %v624 = vld [vmem:[%s3 + $0x70] sm:$0xff]
      %v625 = vld [vmem:[%s3 + $0x78] sm:$0xff]
      %v626 = vld [vmem:[%s4] sm:$0xff]
      %v627 = vld [vmem:[%s4 + $0x8] sm:$0xff]
      %v628 = vld [vmem:[%s4 + $0x10] sm:$0xff]
      %v629 = vld [vmem:[%s4 + $0x18] sm:$0xff]
      %v630 = vld [vmem:[%s4 + $0x20] sm:$0xff]
      %v631 = vld [vmem:[%s4 + $0x28] sm:$0xff]
      %v632 = vld [vmem:[%s4 + $0x30] sm:$0xff]
      %v633 = vld [vmem:[%s4 + $0x38] sm:$0xff]
      %v634 = vld [vmem:[%s4 + $0x40] sm:$0xff]
      %v635 = vld [vmem:[%s4 + $0x48] sm:$0xff]
      %v636 = vld [vmem:[%s4 + $0x50] sm:$0xff]
      %v637 = vld [vmem:[%s4 + $0x58] sm:$0xff]
      %v638 = vld [vmem:[%s4 + $0x60] sm:$0xff]
      %v639 = vld [vmem:[%s4 + $0x68] sm:$0xff]
      %v640 = vld [vmem:[%s4 + $0x70] sm:$0xff]
      %v641 = vld [vmem:[%s4 + $0x78] sm:$0xff]
      %643 = vset.pattern.permute.xlu0 0
      %644 = vperm.xlu0 %643, %v626
      %v645 = vpop.permute.xlu0 %644
      %648 = vset.pattern.permute.xlu0 0
      %649 = vperm.xlu0 %648, %v627
      %v650 = vpop.permute.xlu0 %649
      %653 = vset.pattern.permute.xlu0 0
      %654 = vperm.xlu0 %653, %v628
      %v655 = vpop.permute.xlu0 %654
      %658 = vset.pattern.permute.xlu0 0
      %659 = vperm.xlu0 %658, %v629
      %v660 = vpop.permute.xlu0 %659
      %663 = vset.pattern.permute.xlu0 0
      %664 = vperm.xlu0 %663, %v630
      %v665 = vpop.permute.xlu0 %664
      %668 = vset.pattern.permute.xlu0 0
      %669 = vperm.xlu0 %668, %v631
      %v670 = vpop.permute.xlu0 %669
      %673 = vset.pattern.permute.xlu0 0
      %674 = vperm.xlu0 %673, %v632
      %v675 = vpop.permute.xlu0 %674
      %678 = vset.pattern.permute.xlu0 0
      %679 = vperm.xlu0 %678, %v633
      %v680 = vpop.permute.xlu0 %679
      %683 = vset.pattern.permute.xlu0 0
      %684 = vperm.xlu0 %683, %v634
      %v685 = vpop.permute.xlu0 %684
      %688 = vset.pattern.permute.xlu0 0
      %689 = vperm.xlu0 %688, %v635
      %v690 = vpop.permute.xlu0 %689
      %693 = vset.pattern.permute.xlu0 0
      %694 = vperm.xlu0 %693, %v636
      %v695 = vpop.permute.xlu0 %694
      %698 = vset.pattern.permute.xlu0 0
      %699 = vperm.xlu0 %698, %v637
      %v700 = vpop.permute.xlu0 %699
      %703 = vset.pattern.permute.xlu0 0
      %704 = vperm.xlu0 %703, %v638
      %v705 = vpop.permute.xlu0 %704
      %708 = vset.pattern.permute.xlu0 0
      %709 = vperm.xlu0 %708, %v639
      %v710 = vpop.permute.xlu0 %709
      %713 = vset.pattern.permute.xlu0 0
      %714 = vperm.xlu0 %713, %v640
      %v715 = vpop.permute.xlu0 %714
      %718 = vset.pattern.permute.xlu0 0
      %719 = vperm.xlu0 %718, %v641
      %v720 = vpop.permute.xlu0 %719
      %vm722 = vcmask 523264
      %v724 = vsel %vm722, %v610, 0
      %v727 = vsel %vm722, %v611, 0
      %v730 = vsel %vm722, %v612, 0
      %v733 = vsel %vm722, %v613, 0
      %v736 = vsel %vm722, %v614, 0
      %v739 = vsel %vm722, %v615, 0
      %v742 = vsel %vm722, %v616, 0
      %v745 = vsel %vm722, %v617, 0
      %v748 = vsel %vm722, %v618, 0
      %v751 = vsel %vm722, %v619, 0
      %v754 = vsel %vm722, %v620, 0
      %v757 = vsel %vm722, %v621, 0
      %v760 = vsel %vm722, %v622, 0
      %v763 = vsel %vm722, %v623, 0
      %v766 = vsel %vm722, %v624, 0
      %v769 = vsel %vm722, %v625, 0
      %771 = vmatpush.msra.mxu0 0.0
      %772 = vmatpush.msra.mxu0 0.0
      %773 = vmatpush.msra.mxu0 0.0
      %774 = vmatpush.msra.mxu0 0.0
      %775 = vmatpush.msra.mxu0 0.0
      %776 = vmatpush.msra.mxu0 0.0
      %777 = vmatpush.msra.mxu0 0.0
      %778 = vmatpush.msra.mxu0 0.0
      %779 = vmatpush.msra.mxu0 %v608
      %780 = vmatpush.msra.mxu0 %v606
      %781 = vmatpush.msra.mxu0 %v604
      %782 = vmatpush.msra.mxu0 %v602
      %783 = vmatpush.msra.mxu0 %v600
      %784 = vmatpush.msra.mxu0 %v598
      %785 = vmatpush.msra.mxu0 %v596
      %786 = vmatpush.msra.mxu0 %v594
      %787 = vmatmul.f32.gmra.mxu0 %v724
      %v788 = vpop.f32.mrf.mxu0
      %v789 = vadd.f32 %v645, %v788
      %790 = vmatmul.f32.gmra.mxu0 %v727
      %v791 = vpop.f32.mrf.mxu0
      %v792 = vadd.f32 %v650, %v791
      %793 = vmatmul.f32.gmra.mxu0 %v730
      %v794 = vpop.f32.mrf.mxu0
      %v795 = vadd.f32 %v655, %v794
      %796 = vmatmul.f32.gmra.mxu0 %v733
      %v797 = vpop.f32.mrf.mxu0
      %v798 = vadd.f32 %v660, %v797
      %799 = vmatmul.f32.gmra.mxu0 %v736
      %v800 = vpop.f32.mrf.mxu0
      %v801 = vadd.f32 %v665, %v800
      %802 = vmatmul.f32.gmra.mxu0 %v739
      %v803 = vpop.f32.mrf.mxu0
      %v804 = vadd.f32 %v670, %v803
      %805 = vmatmul.f32.gmra.mxu0 %v742
      %v806 = vpop.f32.mrf.mxu0
      %v807 = vadd.f32 %v675, %v806
      %808 = vmatmul.f32.gmra.mxu0 %v745
      %v809 = vpop.f32.mrf.mxu0
      %v810 = vadd.f32 %v680, %v809
      %811 = vmatmul.f32.gmra.mxu0 %v748
      %v812 = vpop.f32.mrf.mxu0
      %v813 = vadd.f32 %v685, %v812
      %814 = vmatmul.f32.gmra.mxu0 %v751
      %v815 = vpop.f32.mrf.mxu0
      %v816 = vadd.f32 %v690, %v815
      %817 = vmatmul.f32.gmra.mxu0 %v754
      %v818 = vpop.f32.mrf.mxu0
      %v819 = vadd.f32 %v695, %v818
      %820 = vmatmul.f32.gmra.mxu0 %v757
      %v821 = vpop.f32.mrf.mxu0
      %v822 = vadd.f32 %v700, %v821
      %823 = vmatmul.f32.gmra.mxu0 %v760
      %v824 = vpop.f32.mrf.mxu0
      %v825 = vadd.f32 %v705, %v824
      %826 = vmatmul.f32.gmra.mxu0 %v763
      %v827 = vpop.f32.mrf.mxu0
      %v828 = vadd.f32 %v710, %v827
      %829 = vmatmul.f32.gmra.mxu0 %v766
      %v830 = vpop.f32.mrf.mxu0
      %v831 = vadd.f32 %v715, %v830
      %832 = vmatmul.f32.gmra.mxu0 %v769
      %v833 = vpop.f32.mrf.mxu0
      %v834 = vadd.f32 %v720, %v833
      %835 = vdwg.mxu0
      %836 = vmatpush.msra.mxu0 0.0
      %837 = vmatpush.msra.mxu0 0.0
      %838 = vmatpush.msra.mxu0 0.0
      %839 = vmatpush.msra.mxu0 0.0
      %840 = vmatpush.msra.mxu0 0.0
      %841 = vmatpush.msra.mxu0 0.0
      %842 = vmatpush.msra.mxu0 0.0
      %843 = vmatpush.msra.mxu0 0.0
      %844 = vmatpush.msra.mxu0 %v609
      %845 = vmatpush.msra.mxu0 %v607
      %846 = vmatpush.msra.mxu0 %v605
      %847 = vmatpush.msra.mxu0 %v603
      %848 = vmatpush.msra.mxu0 %v601
      %849 = vmatpush.msra.mxu0 %v599
      %850 = vmatpush.msra.mxu0 %v597
      %851 = vmatpush.msra.mxu0 %v595
      %852 = vmatmul.f32.gmra.mxu0 %v724
      %v853 = vpop.f32.mrf.mxu0
      %v854 = vadd.f32 %v645, %v853
      %855 = vmatmul.f32.gmra.mxu0 %v727
      %v856 = vpop.f32.mrf.mxu0
      %v857 = vadd.f32 %v650, %v856
      %858 = vmatmul.f32.gmra.mxu0 %v730
      %v859 = vpop.f32.mrf.mxu0
      %v860 = vadd.f32 %v655, %v859
      %861 = vmatmul.f32.gmra.mxu0 %v733
      %v862 = vpop.f32.mrf.mxu0
      %v863 = vadd.f32 %v660, %v862
      %864 = vmatmul.f32.gmra.mxu0 %v736
      %v865 = vpop.f32.mrf.mxu0
      %v866 = vadd.f32 %v665, %v865
      %867 = vmatmul.f32.gmra.mxu0 %v739
      %v868 = vpop.f32.mrf.mxu0
      %v869 = vadd.f32 %v670, %v868
      %870 = vmatmul.f32.gmra.mxu0 %v742
      %v871 = vpop.f32.mrf.mxu0
      %v872 = vadd.f32 %v675, %v871
      %873 = vmatmul.f32.gmra.mxu0 %v745
      %v874 = vpop.f32.mrf.mxu0
      %v875 = vadd.f32 %v680, %v874
      %876 = vmatmul.f32.gmra.mxu0 %v748
      %v877 = vpop.f32.mrf.mxu0
      %v878 = vadd.f32 %v685, %v877
      %879 = vmatmul.f32.gmra.mxu0 %v751
      %v880 = vpop.f32.mrf.mxu0
      %v881 = vadd.f32 %v690, %v880
      %882 = vmatmul.f32.gmra.mxu0 %v754
      %v883 = vpop.f32.mrf.mxu0
      %v884 = vadd.f32 %v695, %v883
      %885 = vmatmul.f32.gmra.mxu0 %v757
      %v886 = vpop.f32.mrf.mxu0
      %v887 = vadd.f32 %v700, %v886
      %888 = vmatmul.f32.gmra.mxu0 %v760
      %v889 = vpop.f32.mrf.mxu0
      %v890 = vadd.f32 %v705, %v889
      %891 = vmatmul.f32.gmra.mxu0 %v763
      %v892 = vpop.f32.mrf.mxu0
      %v893 = vadd.f32 %v710, %v892
      %894 = vmatmul.f32.gmra.mxu0 %v766
      %v895 = vpop.f32.mrf.mxu0
      %v896 = vadd.f32 %v715, %v895
      %897 = vmatmul.f32.gmra.mxu0 %v769
      %v898 = vpop.f32.mrf.mxu0
      %v899 = vadd.f32 %v720, %v898
      %900 = vdwg.mxu0
      %v901 = vmax.f32 %v789, 0.0
      %v902 = vmax.f32 %v854, 0.0
      %v903 = vmax.f32 %v792, 0.0
      %v904 = vmax.f32 %v857, 0.0
      %v905 = vmax.f32 %v795, 0.0
      %v906 = vmax.f32 %v860, 0.0
      %v907 = vmax.f32 %v798, 0.0
      %v908 = vmax.f32 %v863, 0.0
      %v909 = vmax.f32 %v801, 0.0
      %v910 = vmax.f32 %v866, 0.0
      %v911 = vmax.f32 %v804, 0.0
      %v912 = vmax.f32 %v869, 0.0
      %v913 = vmax.f32 %v807, 0.0
      %v914 = vmax.f32 %v872, 0.0
      %v915 = vmax.f32 %v810, 0.0
      %v916 = vmax.f32 %v875, 0.0
      %v917 = vmax.f32 %v813, 0.0
      %v918 = vmax.f32 %v878, 0.0
      %v919 = vmax.f32 %v816, 0.0
      %v920 = vmax.f32 %v881, 0.0
      %v921 = vmax.f32 %v819, 0.0
      %v922 = vmax.f32 %v884, 0.0
      %v923 = vmax.f32 %v822, 0.0
      %v924 = vmax.f32 %v887, 0.0
      %v925 = vmax.f32 %v825, 0.0
      %v926 = vmax.f32 %v890, 0.0
      %v927 = vmax.f32 %v828, 0.0
      %v928 = vmax.f32 %v893, 0.0
      %v929 = vmax.f32 %v831, 0.0
      %v930 = vmax.f32 %v896, 0.0
      %v931 = vmax.f32 %v834, 0.0
      %v932 = vmax.f32 %v899, 0.0
      %v933 = vld [vmem:[%s5] sm:$0xff]
      %v934 = vld [vmem:[%s5 + $0x8] sm:$0xff]
      %v935 = vld [vmem:[%s5 + $0x10] sm:$0xff]
      %v936 = vld [vmem:[%s5 + $0x18] sm:$0xff]
      %v937 = vld [vmem:[%s5 + $0x20] sm:$0xff]
      %v938 = vld [vmem:[%s5 + $0x28] sm:$0xff]
      %v939 = vld [vmem:[%s5 + $0x30] sm:$0xff]
      %v940 = vld [vmem:[%s5 + $0x38] sm:$0xff]
      %v941 = vld [vmem:[%s5 + $0x40] sm:$0xff]
      %v942 = vld [vmem:[%s5 + $0x48] sm:$0xff]
      %v943 = vld [vmem:[%s5 + $0x50] sm:$0xff]
      %v944 = vld [vmem:[%s5 + $0x58] sm:$0xff]
      %v945 = vld [vmem:[%s5 + $0x60] sm:$0xff]
      %v946 = vld [vmem:[%s5 + $0x68] sm:$0xff]
      %v947 = vld [vmem:[%s5 + $0x70] sm:$0xff]
      %v948 = vld [vmem:[%s5 + $0x78] sm:$0xff]
      %v949 = vld [vmem:[%s5 + $0x80] sm:$0xff]
      %v950 = vld [vmem:[%s5 + $0x88] sm:$0xff]
      %v951 = vld [vmem:[%s5 + $0x90] sm:$0xff]
      %v952 = vld [vmem:[%s5 + $0x98] sm:$0xff]
      %v953 = vld [vmem:[%s5 + $0xa0] sm:$0xff]
      %v954 = vld [vmem:[%s5 + $0xa8] sm:$0xff]
      %v955 = vld [vmem:[%s5 + $0xb0] sm:$0xff]
      %v956 = vld [vmem:[%s5 + $0xb8] sm:$0xff]
      %v957 = vld [vmem:[%s5 + $0xc0] sm:$0xff]
      %v958 = vld [vmem:[%s5 + $0xc8] sm:$0xff]
      %v959 = vld [vmem:[%s5 + $0xd0] sm:$0xff]
      %v960 = vld [vmem:[%s5 + $0xd8] sm:$0xff]
      %v961 = vld [vmem:[%s5 + $0xe0] sm:$0xff]
      %v962 = vld [vmem:[%s5 + $0xe8] sm:$0xff]
      %v963 = vld [vmem:[%s5 + $0xf0] sm:$0xff]
      %v964 = vld [vmem:[%s5 + $0xf8] sm:$0xff]
      %v965 = vld [vmem:[%s6] sm:$0xff]
      %v966 = vld [vmem:[%s6 + $0x8] sm:$0xff]
      %v967 = vld [vmem:[%s6 + $0x10] sm:$0xff]
      %v968 = vld [vmem:[%s6 + $0x18] sm:$0xff]
      %v969 = vld [vmem:[%s6 + $0x20] sm:$0xff]
      %v970 = vld [vmem:[%s6 + $0x28] sm:$0xff]
      %v971 = vld [vmem:[%s6 + $0x30] sm:$0xff]
      %v972 = vld [vmem:[%s6 + $0x38] sm:$0xff]
      %v973 = vld [vmem:[%s6 + $0x40] sm:$0xff]
      %v974 = vld [vmem:[%s6 + $0x48] sm:$0xff]
      %v975 = vld [vmem:[%s6 + $0x50] sm:$0xff]
      %v976 = vld [vmem:[%s6 + $0x58] sm:$0xff]
      %v977 = vld [vmem:[%s6 + $0x60] sm:$0xff]
      %v978 = vld [vmem:[%s6 + $0x68] sm:$0xff]
      %v979 = vld [vmem:[%s6 + $0x70] sm:$0xff]
      %v980 = vld [vmem:[%s6 + $0x78] sm:$0xff]
      %v981 = vld [vmem:[%s6 + $0x80] sm:$0xff]
      %v982 = vld [vmem:[%s6 + $0x88] sm:$0xff]
      %v983 = vld [vmem:[%s6 + $0x90] sm:$0xff]
      %v984 = vld [vmem:[%s6 + $0x98] sm:$0xff]
      %v985 = vld [vmem:[%s6 + $0xa0] sm:$0xff]
      %v986 = vld [vmem:[%s6 + $0xa8] sm:$0xff]
      %v987 = vld [vmem:[%s6 + $0xb0] sm:$0xff]
      %v988 = vld [vmem:[%s6 + $0xb8] sm:$0xff]
      %v989 = vld [vmem:[%s6 + $0xc0] sm:$0xff]
      %v990 = vld [vmem:[%s6 + $0xc8] sm:$0xff]
      %v991 = vld [vmem:[%s6 + $0xd0] sm:$0xff]
      %v992 = vld [vmem:[%s6 + $0xd8] sm:$0xff]
      %v993 = vld [vmem:[%s6 + $0xe0] sm:$0xff]
      %v994 = vld [vmem:[%s6 + $0xe8] sm:$0xff]
      %v995 = vld [vmem:[%s6 + $0xf0] sm:$0xff]
      %v996 = vld [vmem:[%s6 + $0xf8] sm:$0xff]
      %998 = vset.pattern.permute.xlu0 0
      %999 = vperm.xlu0 %998, %v965
      %v1000 = vpop.permute.xlu0 %999
      %1003 = vset.pattern.permute.xlu0 0
      %1004 = vperm.xlu0 %1003, %v966
      %v1005 = vpop.permute.xlu0 %1004
      %1008 = vset.pattern.permute.xlu0 0
      %1009 = vperm.xlu0 %1008, %v967
      %v1010 = vpop.permute.xlu0 %1009
      %1013 = vset.pattern.permute.xlu0 0
      %1014 = vperm.xlu0 %1013, %v968
      %v1015 = vpop.permute.xlu0 %1014
      %1018 = vset.pattern.permute.xlu0 0
      %1019 = vperm.xlu0 %1018, %v969
      %v1020 = vpop.permute.xlu0 %1019
      %1023 = vset.pattern.permute.xlu0 0
      %1024 = vperm.xlu0 %1023, %v970
      %v1025 = vpop.permute.xlu0 %1024
      %1028 = vset.pattern.permute.xlu0 0
      %1029 = vperm.xlu0 %1028, %v971
      %v1030 = vpop.permute.xlu0 %1029
      %1033 = vset.pattern.permute.xlu0 0
      %1034 = vperm.xlu0 %1033, %v972
      %v1035 = vpop.permute.xlu0 %1034
      %1038 = vset.pattern.permute.xlu0 0
      %1039 = vperm.xlu0 %1038, %v973
      %v1040 = vpop.permute.xlu0 %1039
      %1043 = vset.pattern.permute.xlu0 0
      %1044 = vperm.xlu0 %1043, %v974
      %v1045 = vpop.permute.xlu0 %1044
      %1048 = vset.pattern.permute.xlu0 0
      %1049 = vperm.xlu0 %1048, %v975
      %v1050 = vpop.permute.xlu0 %1049
      %1053 = vset.pattern.permute.xlu0 0
      %1054 = vperm.xlu0 %1053, %v976
      %v1055 = vpop.permute.xlu0 %1054
      %1058 = vset.pattern.permute.xlu0 0
      %1059 = vperm.xlu0 %1058, %v977
      %v1060 = vpop.permute.xlu0 %1059
      %1063 = vset.pattern.permute.xlu0 0
      %1064 = vperm.xlu0 %1063, %v978
      %v1065 = vpop.permute.xlu0 %1064
      %1068 = vset.pattern.permute.xlu0 0
      %1069 = vperm.xlu0 %1068, %v979
      %v1070 = vpop.permute.xlu0 %1069
      %1073 = vset.pattern.permute.xlu0 0
      %1074 = vperm.xlu0 %1073, %v980
      %v1075 = vpop.permute.xlu0 %1074
      %1078 = vset.pattern.permute.xlu0 0
      %1079 = vperm.xlu0 %1078, %v981
      %v1080 = vpop.permute.xlu0 %1079
      %1083 = vset.pattern.permute.xlu0 0
      %1084 = vperm.xlu0 %1083, %v982
      %v1085 = vpop.permute.xlu0 %1084
      %1088 = vset.pattern.permute.xlu0 0
      %1089 = vperm.xlu0 %1088, %v983
      %v1090 = vpop.permute.xlu0 %1089
      %1093 = vset.pattern.permute.xlu0 0
      %1094 = vperm.xlu0 %1093, %v984
      %v1095 = vpop.permute.xlu0 %1094
      %1098 = vset.pattern.permute.xlu0 0
      %1099 = vperm.xlu0 %1098, %v985
      %v1100 = vpop.permute.xlu0 %1099
      %1103 = vset.pattern.permute.xlu0 0
      %1104 = vperm.xlu0 %1103, %v986
      %v1105 = vpop.permute.xlu0 %1104
      %1108 = vset.pattern.permute.xlu0 0
      %1109 = vperm.xlu0 %1108, %v987
      %v1110 = vpop.permute.xlu0 %1109
      %1113 = vset.pattern.permute.xlu0 0
      %1114 = vperm.xlu0 %1113, %v988
      %v1115 = vpop.permute.xlu0 %1114
      %1118 = vset.pattern.permute.xlu0 0
      %1119 = vperm.xlu0 %1118, %v989
      %v1120 = vpop.permute.xlu0 %1119
      %1123 = vset.pattern.permute.xlu0 0
      %1124 = vperm.xlu0 %1123, %v990
      %v1125 = vpop.permute.xlu0 %1124
      %1128 = vset.pattern.permute.xlu0 0
      %1129 = vperm.xlu0 %1128, %v991
      %v1130 = vpop.permute.xlu0 %1129
      %1133 = vset.pattern.permute.xlu0 0
      %1134 = vperm.xlu0 %1133, %v992
      %v1135 = vpop.permute.xlu0 %1134
      %1138 = vset.pattern.permute.xlu0 0
      %1139 = vperm.xlu0 %1138, %v993
      %v1140 = vpop.permute.xlu0 %1139
      %1143 = vset.pattern.permute.xlu0 0
      %1144 = vperm.xlu0 %1143, %v994
      %v1145 = vpop.permute.xlu0 %1144
      %1148 = vset.pattern.permute.xlu0 0
      %1149 = vperm.xlu0 %1148, %v995
      %v1150 = vpop.permute.xlu0 %1149
      %1153 = vset.pattern.permute.xlu0 0
      %1154 = vperm.xlu0 %1153, %v996
      %v1155 = vpop.permute.xlu0 %1154
      %1157 = vmatpush.msra.mxu0 %v931
      %1158 = vmatpush.msra.mxu0 %v929
      %1159 = vmatpush.msra.mxu0 %v927
      %1160 = vmatpush.msra.mxu0 %v925
      %1161 = vmatpush.msra.mxu0 %v923
      %1162 = vmatpush.msra.mxu0 %v921
      %1163 = vmatpush.msra.mxu0 %v919
      %1164 = vmatpush.msra.mxu0 %v917
      %1165 = vmatpush.msra.mxu0 %v915
      %1166 = vmatpush.msra.mxu0 %v913
      %1167 = vmatpush.msra.mxu0 %v911
      %1168 = vmatpush.msra.mxu0 %v909
      %1169 = vmatpush.msra.mxu0 %v907
      %1170 = vmatpush.msra.mxu0 %v905
      %1171 = vmatpush.msra.mxu0 %v903
      %1172 = vmatpush.msra.mxu0 %v901
      %1173 = vmatmul.f32.gmra.mxu0 %v933
      %v1174 = vpop.f32.mrf.mxu0
      %v1175 = vadd.f32 %v1000, %v1174
      %1176 = vmatmul.f32.gmra.mxu0 %v934
      %v1177 = vpop.f32.mrf.mxu0
      %v1178 = vadd.f32 %v1005, %v1177
      %1179 = vmatmul.f32.gmra.mxu0 %v935
      %v1180 = vpop.f32.mrf.mxu0
      %v1181 = vadd.f32 %v1010, %v1180
      %1182 = vmatmul.f32.gmra.mxu0 %v936
      %v1183 = vpop.f32.mrf.mxu0
      %v1184 = vadd.f32 %v1015, %v1183
      %1185 = vmatmul.f32.gmra.mxu0 %v937
      %v1186 = vpop.f32.mrf.mxu0
      %v1187 = vadd.f32 %v1020, %v1186
      %1188 = vmatmul.f32.gmra.mxu0 %v938
      %v1189 = vpop.f32.mrf.mxu0
      %v1190 = vadd.f32 %v1025, %v1189
      %1191 = vmatmul.f32.gmra.mxu0 %v939
      %v1192 = vpop.f32.mrf.mxu0
      %v1193 = vadd.f32 %v1030, %v1192
      %1194 = vmatmul.f32.gmra.mxu0 %v940
      %v1195 = vpop.f32.mrf.mxu0
      %v1196 = vadd.f32 %v1035, %v1195
      %1197 = vmatmul.f32.gmra.mxu0 %v941
      %v1198 = vpop.f32.mrf.mxu0
      %v1199 = vadd.f32 %v1040, %v1198
      %1200 = vmatmul.f32.gmra.mxu0 %v942
      %v1201 = vpop.f32.mrf.mxu0
      %v1202 = vadd.f32 %v1045, %v1201
      %1203 = vmatmul.f32.gmra.mxu0 %v943
      %v1204 = vpop.f32.mrf.mxu0
      %v1205 = vadd.f32 %v1050, %v1204
      %1206 = vmatmul.f32.gmra.mxu0 %v944
      %v1207 = vpop.f32.mrf.mxu0
      %v1208 = vadd.f32 %v1055, %v1207
      %1209 = vmatmul.f32.gmra.mxu0 %v945
      %v1210 = vpop.f32.mrf.mxu0
      %v1211 = vadd.f32 %v1060, %v1210
      %1212 = vmatmul.f32.gmra.mxu0 %v946
      %v1213 = vpop.f32.mrf.mxu0
      %v1214 = vadd.f32 %v1065, %v1213
      %1215 = vmatmul.f32.gmra.mxu0 %v947
      %v1216 = vpop.f32.mrf.mxu0
      %v1217 = vadd.f32 %v1070, %v1216
      %1218 = vmatmul.f32.gmra.mxu0 %v948
      %v1219 = vpop.f32.mrf.mxu0
      %v1220 = vadd.f32 %v1075, %v1219
      %1221 = vmatmul.f32.gmra.mxu0 %v949
      %v1222 = vpop.f32.mrf.mxu0
      %v1223 = vadd.f32 %v1080, %v1222
      %1224 = vmatmul.f32.gmra.mxu0 %v950
      %v1225 = vpop.f32.mrf.mxu0
      %v1226 = vadd.f32 %v1085, %v1225
      %1227 = vmatmul.f32.gmra.mxu0 %v951
      %v1228 = vpop.f32.mrf.mxu0
      %v1229 = vadd.f32 %v1090, %v1228
      %1230 = vmatmul.f32.gmra.mxu0 %v952
      %v1231 = vpop.f32.mrf.mxu0
      %v1232 = vadd.f32 %v1095, %v1231
      %1233 = vmatmul.f32.gmra.mxu0 %v953
      %v1234 = vpop.f32.mrf.mxu0
      %v1235 = vadd.f32 %v1100, %v1234
      %1236 = vmatmul.f32.gmra.mxu0 %v954
      %v1237 = vpop.f32.mrf.mxu0
      %v1238 = vadd.f32 %v1105, %v1237
      %1239 = vmatmul.f32.gmra.mxu0 %v955
      %v1240 = vpop.f32.mrf.mxu0
      %v1241 = vadd.f32 %v1110, %v1240
      %1242 = vmatmul.f32.gmra.mxu0 %v956
      %v1243 = vpop.f32.mrf.mxu0
      %v1244 = vadd.f32 %v1115, %v1243
      %1245 = vmatmul.f32.gmra.mxu0 %v957
      %v1246 = vpop.f32.mrf.mxu0
      %v1247 = vadd.f32 %v1120, %v1246
      %1248 = vmatmul.f32.gmra.mxu0 %v958
      %v1249 = vpop.f32.mrf.mxu0
      %v1250 = vadd.f32 %v1125, %v1249
      %1251 = vmatmul.f32.gmra.mxu0 %v959
      %v1252 = vpop.f32.mrf.mxu0
      %v1253 = vadd.f32 %v1130, %v1252
      %1254 = vmatmul.f32.gmra.mxu0 %v960
      %v1255 = vpop.f32.mrf.mxu0
      %v1256 = vadd.f32 %v1135, %v1255
      %1257 = vmatmul.f32.gmra.mxu0 %v961
      %v1258 = vpop.f32.mrf.mxu0
      %v1259 = vadd.f32 %v1140, %v1258
      %1260 = vmatmul.f32.gmra.mxu0 %v962
      %v1261 = vpop.f32.mrf.mxu0
      %v1262 = vadd.f32 %v1145, %v1261
      %1263 = vmatmul.f32.gmra.mxu0 %v963
      %v1264 = vpop.f32.mrf.mxu0
      %v1265 = vadd.f32 %v1150, %v1264
      %1266 = vmatmul.f32.gmra.mxu0 %v964
      %v1267 = vpop.f32.mrf.mxu0
      %v1268 = vadd.f32 %v1155, %v1267
      %1269 = vdwg.mxu0
      %1270 = vmatpush.msra.mxu0 %v932
      %1271 = vmatpush.msra.mxu0 %v930
      %1272 = vmatpush.msra.mxu0 %v928
      %1273 = vmatpush.msra.mxu0 %v926
      %1274 = vmatpush.msra.mxu0 %v924
      %1275 = vmatpush.msra.mxu0 %v922
      %1276 = vmatpush.msra.mxu0 %v920
      %1277 = vmatpush.msra.mxu0 %v918
      %1278 = vmatpush.msra.mxu0 %v916
      %1279 = vmatpush.msra.mxu0 %v914
      %1280 = vmatpush.msra.mxu0 %v912
      %1281 = vmatpush.msra.mxu0 %v910
      %1282 = vmatpush.msra.mxu0 %v908
      %1283 = vmatpush.msra.mxu0 %v906
      %1284 = vmatpush.msra.mxu0 %v904
      %1285 = vmatpush.msra.mxu0 %v902
      %1286 = vmatmul.f32.gmra.mxu0 %v933
      %v1287 = vpop.f32.mrf.mxu0
      %v1288 = vadd.f32 %v1000, %v1287
      %1289 = vmatmul.f32.gmra.mxu0 %v934
      %v1290 = vpop.f32.mrf.mxu0
      %v1291 = vadd.f32 %v1005, %v1290
      %1292 = vmatmul.f32.gmra.mxu0 %v935
      %v1293 = vpop.f32.mrf.mxu0
      %v1294 = vadd.f32 %v1010, %v1293
      %1295 = vmatmul.f32.gmra.mxu0 %v936
      %v1296 = vpop.f32.mrf.mxu0
      %v1297 = vadd.f32 %v1015, %v1296
      %1298 = vmatmul.f32.gmra.mxu0 %v937
      %v1299 = vpop.f32.mrf.mxu0
      %v1300 = vadd.f32 %v1020, %v1299
      %1301 = vmatmul.f32.gmra.mxu0 %v938
      %v1302 = vpop.f32.mrf.mxu0
      %v1303 = vadd.f32 %v1025, %v1302
      %1304 = vmatmul.f32.gmra.mxu0 %v939
      %v1305 = vpop.f32.mrf.mxu0
      %v1306 = vadd.f32 %v1030, %v1305
      %1307 = vmatmul.f32.gmra.mxu0 %v940
      %v1308 = vpop.f32.mrf.mxu0
      %v1309 = vadd.f32 %v1035, %v1308
      %1310 = vmatmul.f32.gmra.mxu0 %v941
      %v1311 = vpop.f32.mrf.mxu0
      %v1312 = vadd.f32 %v1040, %v1311
      %1313 = vmatmul.f32.gmra.mxu0 %v942
      %v1314 = vpop.f32.mrf.mxu0
      %v1315 = vadd.f32 %v1045, %v1314
      %1316 = vmatmul.f32.gmra.mxu0 %v943
      %v1317 = vpop.f32.mrf.mxu0
      %v1318 = vadd.f32 %v1050, %v1317
      %1319 = vmatmul.f32.gmra.mxu0 %v944
      %v1320 = vpop.f32.mrf.mxu0
      %v1321 = vadd.f32 %v1055, %v1320
      %1322 = vmatmul.f32.gmra.mxu0 %v945
      %v1323 = vpop.f32.mrf.mxu0
      %v1324 = vadd.f32 %v1060, %v1323
      %1325 = vmatmul.f32.gmra.mxu0 %v946
      %v1326 = vpop.f32.mrf.mxu0
      %v1327 = vadd.f32 %v1065, %v1326
      %1328 = vmatmul.f32.gmra.mxu0 %v947
      %v1329 = vpop.f32.mrf.mxu0
      %v1330 = vadd.f32 %v1070, %v1329
      %1331 = vmatmul.f32.gmra.mxu0 %v948
      %v1332 = vpop.f32.mrf.mxu0
      %v1333 = vadd.f32 %v1075, %v1332
      %1334 = vmatmul.f32.gmra.mxu0 %v949
      %v1335 = vpop.f32.mrf.mxu0
      %v1336 = vadd.f32 %v1080, %v1335
      %1337 = vmatmul.f32.gmra.mxu0 %v950
      %v1338 = vpop.f32.mrf.mxu0
      %v1339 = vadd.f32 %v1085, %v1338
      %1340 = vmatmul.f32.gmra.mxu0 %v951
      %v1341 = vpop.f32.mrf.mxu0
      %v1342 = vadd.f32 %v1090, %v1341
      %1343 = vmatmul.f32.gmra.mxu0 %v952
      %v1344 = vpop.f32.mrf.mxu0
      %v1345 = vadd.f32 %v1095, %v1344
      %1346 = vmatmul.f32.gmra.mxu0 %v953
      %v1347 = vpop.f32.mrf.mxu0
      %v1348 = vadd.f32 %v1100, %v1347
      %1349 = vmatmul.f32.gmra.mxu0 %v954
      %v1350 = vpop.f32.mrf.mxu0
      %v1351 = vadd.f32 %v1105, %v1350
      %1352 = vmatmul.f32.gmra.mxu0 %v955
      %v1353 = vpop.f32.mrf.mxu0
      %v1354 = vadd.f32 %v1110, %v1353
      %1355 = vmatmul.f32.gmra.mxu0 %v956
      %v1356 = vpop.f32.mrf.mxu0
      %v1357 = vadd.f32 %v1115, %v1356
      %1358 = vmatmul.f32.gmra.mxu0 %v957
      %v1359 = vpop.f32.mrf.mxu0
      %v1360 = vadd.f32 %v1120, %v1359
      %1361 = vmatmul.f32.gmra.mxu0 %v958
      %v1362 = vpop.f32.mrf.mxu0
      %v1363 = vadd.f32 %v1125, %v1362
      %1364 = vmatmul.f32.gmra.mxu0 %v959
      %v1365 = vpop.f32.mrf.mxu0
      %v1366 = vadd.f32 %v1130, %v1365
      %1367 = vmatmul.f32.gmra.mxu0 %v960
      %v1368 = vpop.f32.mrf.mxu0
      %v1369 = vadd.f32 %v1135, %v1368
      %1370 = vmatmul.f32.gmra.mxu0 %v961
      %v1371 = vpop.f32.mrf.mxu0
      %v1372 = vadd.f32 %v1140, %v1371
      %1373 = vmatmul.f32.gmra.mxu0 %v962
      %v1374 = vpop.f32.mrf.mxu0
      %v1375 = vadd.f32 %v1145, %v1374
      %1376 = vmatmul.f32.gmra.mxu0 %v963
      %v1377 = vpop.f32.mrf.mxu0
      %v1378 = vadd.f32 %v1150, %v1377
      %1379 = vmatmul.f32.gmra.mxu0 %v964
      %v1380 = vpop.f32.mrf.mxu0
      %v1381 = vadd.f32 %v1155, %v1380
      %1382 = vdwg.mxu0
      %v1383 = vmax.f32 %v1175, 0.0
      %v1384 = vmax.f32 %v1288, 0.0
      %v1385 = vmax.f32 %v1178, 0.0
      %v1386 = vmax.f32 %v1291, 0.0
      %v1387 = vmax.f32 %v1181, 0.0
      %v1388 = vmax.f32 %v1294, 0.0
      %v1389 = vmax.f32 %v1184, 0.0
      %v1390 = vmax.f32 %v1297, 0.0
      %v1391 = vmax.f32 %v1187, 0.0
      %v1392 = vmax.f32 %v1300, 0.0
      %v1393 = vmax.f32 %v1190, 0.0
      %v1394 = vmax.f32 %v1303, 0.0
      %v1395 = vmax.f32 %v1193, 0.0
      %v1396 = vmax.f32 %v1306, 0.0
      %v1397 = vmax.f32 %v1196, 0.0
      %v1398 = vmax.f32 %v1309, 0.0
      %v1399 = vmax.f32 %v1199, 0.0
      %v1400 = vmax.f32 %v1312, 0.0
      %v1401 = vmax.f32 %v1202, 0.0
      %v1402 = vmax.f32 %v1315, 0.0
      %v1403 = vmax.f32 %v1205, 0.0
      %v1404 = vmax.f32 %v1318, 0.0
      %v1405 = vmax.f32 %v1208, 0.0
      %v1406 = vmax.f32 %v1321, 0.0
      %v1407 = vmax.f32 %v1211, 0.0
      %v1408 = vmax.f32 %v1324, 0.0
      %v1409 = vmax.f32 %v1214, 0.0
      %v1410 = vmax.f32 %v1327, 0.0
      %v1411 = vmax.f32 %v1217, 0.0
      %v1412 = vmax.f32 %v1330, 0.0
      %v1413 = vmax.f32 %v1220, 0.0
      %v1414 = vmax.f32 %v1333, 0.0
      %v1415 = vmax.f32 %v1223, 0.0
      %v1416 = vmax.f32 %v1336, 0.0
      %v1417 = vmax.f32 %v1226, 0.0
      %v1418 = vmax.f32 %v1339, 0.0
      %v1419 = vmax.f32 %v1229, 0.0
      %v1420 = vmax.f32 %v1342, 0.0
      %v1421 = vmax.f32 %v1232, 0.0
      %v1422 = vmax.f32 %v1345, 0.0
      %v1423 = vmax.f32 %v1235, 0.0
      %v1424 = vmax.f32 %v1348, 0.0
      %v1425 = vmax.f32 %v1238, 0.0
      %v1426 = vmax.f32 %v1351, 0.0
      %v1427 = vmax.f32 %v1241, 0.0
      %v1428 = vmax.f32 %v1354, 0.0
      %v1429 = vmax.f32 %v1244, 0.0
      %v1430 = vmax.f32 %v1357, 0.0
      %v1431 = vmax.f32 %v1247, 0.0
      %v1432 = vmax.f32 %v1360, 0.0
      %v1433 = vmax.f32 %v1250, 0.0
      %v1434 = vmax.f32 %v1363, 0.0
      %v1435 = vmax.f32 %v1253, 0.0
      %v1436 = vmax.f32 %v1366, 0.0
      %v1437 = vmax.f32 %v1256, 0.0
      %v1438 = vmax.f32 %v1369, 0.0
      %v1439 = vmax.f32 %v1259, 0.0
      %v1440 = vmax.f32 %v1372, 0.0
      %v1441 = vmax.f32 %v1262, 0.0
      %v1442 = vmax.f32 %v1375, 0.0
      %v1443 = vmax.f32 %v1265, 0.0
      %v1444 = vmax.f32 %v1378, 0.0
      %v1445 = vmax.f32 %v1268, 0.0
      %v1446 = vmax.f32 %v1381, 0.0
      %v1447 = vld [vmem:[%s7] sm:$0xff]
      %v1448 = vld [vmem:[%s7 + $0x8] sm:$0xff]
      %1449 = vmatpush.msra.mxu0 %v1413
      %1450 = vmatpush.msra.mxu0 %v1411
      %1451 = vmatpush.msra.mxu0 %v1409
      %1452 = vmatpush.msra.mxu0 %v1407
      %1453 = vmatpush.msra.mxu0 %v1405
      %1454 = vmatpush.msra.mxu0 %v1403
      %1455 = vmatpush.msra.mxu0 %v1401
      %1456 = vmatpush.msra.mxu0 %v1399
      %1457 = vmatpush.msra.mxu0 %v1397
      %1458 = vmatpush.msra.mxu0 %v1395
      %1459 = vmatpush.msra.mxu0 %v1393
      %1460 = vmatpush.msra.mxu0 %v1391
      %1461 = vmatpush.msra.mxu0 %v1389
      %1462 = vmatpush.msra.mxu0 %v1387
      %1463 = vmatpush.msra.mxu0 %v1385
      %1464 = vmatpush.msra.mxu0 %v1383
      %1465 = vmatmul.f32.gmra.mxu0 %v1447
      %v1466 = vpop.f32.mrf.mxu0
      %v1467 = vadd.f32 0.0, %v1466
      %1468 = vdwg.mxu0
      %1469 = vmatpush.msra.mxu0 %v1445
      %1470 = vmatpush.msra.mxu0 %v1443
      %1471 = vmatpush.msra.mxu0 %v1441
      %1472 = vmatpush.msra.mxu0 %v1439
      %1473 = vmatpush.msra.mxu0 %v1437
      %1474 = vmatpush.msra.mxu0 %v1435
      %1475 = vmatpush.msra.mxu0 %v1433
      %1476 = vmatpush.msra.mxu0 %v1431
      %1477 = vmatpush.msra.mxu0 %v1429
      %1478 = vmatpush.msra.mxu0 %v1427
      %1479 = vmatpush.msra.mxu0 %v1425
      %1480 = vmatpush.msra.mxu0 %v1423
      %1481 = vmatpush.msra.mxu0 %v1421
      %1482 = vmatpush.msra.mxu0 %v1419
      %1483 = vmatpush.msra.mxu0 %v1417
      %1484 = vmatpush.msra.mxu0 %v1415
      %1485 = vmatmul.f32.gmra.mxu0 %v1448
      %v1486 = vpop.f32.mrf.mxu0
      %v1487 = vadd.f32 %v1467, %v1486
      %1488 = vdwg.mxu0
      %1489 = vmatpush.msra.mxu0 %v1414
      %1490 = vmatpush.msra.mxu0 %v1412
      %1491 = vmatpush.msra.mxu0 %v1410
      %1492 = vmatpush.msra.mxu0 %v1408
      %1493 = vmatpush.msra.mxu0 %v1406
      %1494 = vmatpush.msra.mxu0 %v1404
      %1495 = vmatpush.msra.mxu0 %v1402
      %1496 = vmatpush.msra.mxu0 %v1400
      %1497 = vmatpush.msra.mxu0 %v1398
      %1498 = vmatpush.msra.mxu0 %v1396
      %1499 = vmatpush.msra.mxu0 %v1394
      %1500 = vmatpush.msra.mxu0 %v1392
      %1501 = vmatpush.msra.mxu0 %v1390
      %1502 = vmatpush.msra.mxu0 %v1388
      %1503 = vmatpush.msra.mxu0 %v1386
      %1504 = vmatpush.msra.mxu0 %v1384
      %1505 = vmatmul.f32.gmra.mxu0 %v1447
      %v1506 = vpop.f32.mrf.mxu0
      %v1507 = vadd.f32 0.0, %v1506
      %1508 = vdwg.mxu0
      %1509 = vmatpush.msra.mxu0 %v1446
      %1510 = vmatpush.msra.mxu0 %v1444
      %1511 = vmatpush.msra.mxu0 %v1442
      %1512 = vmatpush.msra.mxu0 %v1440
      %1513 = vmatpush.msra.mxu0 %v1438
      %1514 = vmatpush.msra.mxu0 %v1436
      %1515 = vmatpush.msra.mxu0 %v1434
      %1516 = vmatpush.msra.mxu0 %v1432
      %1517 = vmatpush.msra.mxu0 %v1430
      %1518 = vmatpush.msra.mxu0 %v1428
      %1519 = vmatpush.msra.mxu0 %v1426
      %1520 = vmatpush.msra.mxu0 %v1424
      %1521 = vmatpush.msra.mxu0 %v1422
      %1522 = vmatpush.msra.mxu0 %v1420
      %1523 = vmatpush.msra.mxu0 %v1418
      %1524 = vmatpush.msra.mxu0 %v1416
      %1525 = vmatmul.f32.gmra.mxu0 %v1448
      %v1526 = vpop.f32.mrf.mxu0
      %v1527 = vadd.f32 %v1507, %v1526
      %1528 = vdwg.mxu0
      %v1529 = vld [vmem:[#allocation2] sm:$0x1]
      %1531 = vset.pattern.permute.xlu0 0
      %1532 = vperm.xlu0 %1531, %v1529
      %v1533 = vpop.permute.xlu0 %1532
      %v1535 = vperm.slane %v1533, 0
      %v1536 = vadd.f32 %v1487, %v1535
      %v1537 = vadd.f32 %v1527, %v1535
      %v1540 = vrot.slane %v1537, 7
      %vm1541 = vcmask 1040384
      %v1542 = vsel %vm1541, %v1536, %v1540
      %v1544 = vlaneseq
      %vm1545 = vcmp.ge.s32.totalorder %v1544, 0
      %vm1546 = vcmp.lt.s32.totalorder %v1544, 256
      %vm1547 = vmand %vm1545, %vm1546
      %1548 = vst.msk [vmem:[%s419] sm:$0x3] %vm1547, %v1542
      %v1549 = vxor.u32 %v1536, 2147483648
      %v1550 = vxor.u32 %v1537, 2147483648
      %v1551 = vmul.f32 %v1549, 1.442695
      %v1552 = vpow.pop %v1551
      %v1553 = vmul.f32 %v1550, 1.442695
      %v1554 = vpow.pop %v1553
      %v1555 = vadd.f32 %v1552, 1.0
      %v1556 = vadd.f32 %v1554, 1.0
      %v1557 = vrcp.pop %v1555
      %v1558 = vmul.f32 %v1555, %v1557
      %v1559 = vsub.f32 1.0, %v1558
      %v1560 = vmul.f32 %v1557, %v1559
      %v1561 = vadd.f32 %v1557, %v1560
      %vm1562 = vweird.f32 %v1555
      %vm1563 = vweird.f32 %v1557
      %vm1564 = vmor %vm1562, %vm1563
      %v1565 = vsel %vm1564, %v1557, %v1561
      %v1566 = vand.u32 2147483647, %v1555
      %vm1567 = vcmp.eq.f32.partialorder %v1566, 8.507059e+37
      %v1568 = vand.u32 %v1555, 2147483648
      %v1569 = vor.u32 1.1754944e-38, %v1568
      %v1570 = vsel %vm1567, %v1569, %v1565
      %v1571 = vmul.f32 1.0, %v1570
      %v1572 = vrcp.pop %v1556
      %v1573 = vmul.f32 %v1556, %v1572
      %v1574 = vsub.f32 1.0, %v1573
      %v1575 = vmul.f32 %v1572, %v1574
      %v1576 = vadd.f32 %v1572, %v1575
      %vm1577 = vweird.f32 %v1556
      %vm1578 = vweird.f32 %v1572
      %vm1579 = vmor %vm1577, %vm1578
      %v1580 = vsel %vm1579, %v1572, %v1576
      %v1581 = vand.u32 2147483647, %v1556
      %vm1582 = vcmp.eq.f32.partialorder %v1581, 8.507059e+37
      %v1583 = vand.u32 %v1556, 2147483648
      %v1584 = vor.u32 1.1754944e-38, %v1583
      %v1585 = vsel %vm1582, %v1584, %v1580
      %v1586 = vmul.f32 1.0, %v1585
      %v1589 = vrot.slane %v1586, 7
      %v1590 = vsel %vm1541, %v1571, %v1589
      %1592 = vst.msk [vmem:[%s410] sm:$0x3] %vm1547, %v1590
      %s1593 = smul.u32 2, %s29
      %p1594 = scmp.lt.s32.totalorder %s28, 1
      %s1595 = scalar_select %p1594, %s28, 1
      %p1596 = scmp.lt.s32.totalorder %s1593, 1
      %s1597 = scalar_select %p1596, %s1593, 1
      %s1598 = smul.addr %s1595, 2
      %s1599 = sadd.s32 %s1597, %s1598
      %s1600 = scalar_lea.vmem %s9, %s1599
      %s1601 = smul.u32 2, %s29
      %p1602 = scmp.lt.s32.totalorder %s28, 1
      %s1603 = scalar_select %p1602, %s28, 1
      %p1604 = scmp.lt.s32.totalorder %s1601, 1
      %s1605 = scalar_select %p1604, %s1601, 1
      %s1606 = smul.addr %s1603, 2
      %s1607 = sadd.s32 %s1605, %s1606
      %s1608 = scalar_lea.vmem %s10, %s1607
      // Predicated region
      $region57: #{latent2d_grid_discriminator.1} parent=55 // pred_check
        %p1609 = pneg %p252
      $region58: #{latent2d_grid_discriminator.1} parent=55 // pred_check_branch
        %1611 = sbr.rel (%p1609) target = $region60
      $region59: #{latent2d_grid_discriminator.1} parent=55 // pred_region
        %s1612 = smul.u32 2, %s29
      $region60: #{latent2d_grid_discriminator.1} parent=55 // pred_fallthru
        _
      // Predicated region
      $region61: #{latent2d_grid_discriminator.1} parent=55 // pred_check
        %p1613 = pneg %p280
      $region62: #{latent2d_grid_discriminator.1} parent=55 // pred_check_branch
        %1615 = sbr.rel (%p1613) target = $region64
      $region63: #{latent2d_grid_discriminator.1} parent=55 // pred_region
        %s1616 = smul.u32 2, %s29
      $region64: #{latent2d_grid_discriminator.1} parent=55 // pred_fallthru
        _
    $region56: #{latent2d_grid_discriminator.1} parent=5 // pred_fallthru
      _
    %p1617 = scmp.le.s32.totalorder 2, %s19
    // Predicated region
    $region65: #{latent2d_grid_discriminator.1} parent=5 // pred_check
      %p1618 = pneg %p1617
    $region66: #{latent2d_grid_discriminator.1} parent=5 // pred_check_branch
      %1620 = sbr.rel (%p1618) target = $region68
    $region67: #{latent2d_grid_discriminator.1} parent=5 // pred_region
      %s1621 = ssub.s32 %s19, 2
      // Predicated region
      $region69: #{latent2d_grid_discriminator.1} parent=67 // pred_check
        %p1622 = pneg %p258
      $region70: #{latent2d_grid_discriminator.1} parent=67 // pred_check_branch
        %1624 = sbr.rel (%p1622) target = $region72
      $region71: #{latent2d_grid_discriminator.1} parent=67 // pred_region
        %s1625 = smul.u32 2, %s31
        %p1626 = scmp.lt.s32.totalorder %s30, 1
        %s1627 = scalar_select %p1626, %s30, 1
        %p1628 = scmp.lt.s32.totalorder %s1625, 1
        %s1629 = scalar_select %p1628, %s1625, 1
        %s1630 = smul.addr %s1627, 2
        %s1631 = sadd.s32 %s1629, %s1630
        %s1632 = scalar_lea.vmem %s9, %s1631
      $region72: #{latent2d_grid_discriminator.1} parent=67 // pred_fallthru
        _
      // Predicated region
      $region73: #{latent2d_grid_discriminator.1} parent=67 // pred_check
        %p1633 = pneg %p286
      $region74: #{latent2d_grid_discriminator.1} parent=67 // pred_check_branch
        %1635 = sbr.rel (%p1633) target = $region76
      $region75: #{latent2d_grid_discriminator.1} parent=67 // pred_region
        %s1636 = smul.u32 2, %s31
        %p1637 = scmp.lt.s32.totalorder %s30, 1
        %s1638 = scalar_select %p1637, %s30, 1
        %p1639 = scmp.lt.s32.totalorder %s1636, 1
        %s1640 = scalar_select %p1639, %s1636, 1
        %s1641 = smul.addr %s1638, 2
        %s1642 = sadd.s32 %s1640, %s1641
        %s1643 = scalar_lea.vmem %s10, %s1642
      $region76: #{latent2d_grid_discriminator.1} parent=67 // pred_fallthru
        _
    $region68: #{latent2d_grid_discriminator.1} parent=5 // pred_fallthru
      _
  $region6: #{latent2d_grid_discriminator.1} parent=0 // loop_footer
    %s23 = sadd.s32 1, %s19
  $region7: #{latent2d_grid_discriminator.1} parent=0 // loop_footer_branch
    %18 = sbr.rel target = $region3
  $region8: #{latent2d_grid_discriminator.1} parent=0 // loop_exit
    _

</llo_original>
